<compile_context>
chip_gen: v5e
topology: v5e:2x2
jax: 0.10.0
libtpu: 0.0.40
codegen_flags: <defaults>
</compile_context>

<pallas_src>
import functools

import jax
import jax.numpy as jnp
from jax.experimental import pallas as pl
from jax.experimental.pallas import tpu as pltpu


# ----------------------------------------------------------------------------
# Kernel helpers
# ----------------------------------------------------------------------------
def _sigmoid(x):
    # logistic via a single EUP tanh op (the kernel is EUP-slot bound;
    # exp + divide is ~2x the transcendental cost).  Mathematically exact.
    return 0.5 * (1.0 + jnp.tanh(0.5 * x))


def _prednet_tail(com_sta, com_kdf, kpe_ref,
                  w1_ref, b1_ref, w2_ref, b2_ref, w3_ref, b3_ref, out_ref):
    """Shared tail: input_x construction + PosLinear prediction net."""
    f32 = jnp.float32
    bf16 = jnp.bfloat16
    K = com_sta.shape[0]

    kp = kpe_ref[:K, :].astype(f32)                       # 0/1 mask (exact in bf16)
    e_diff = _sigmoid(kpe_ref[K:, :].astype(f32))         # (1, TB)

    # input_x = e_difficulty * (com_sta_emb - com_k_difficulty) * kp
    x = e_diff * (com_sta - com_kdf) * kp                 # (K, TB) f32

    # prednet_full1/2 (PosLinear weights == |w|); dropout = identity (eval).
    h1 = _sigmoid(jnp.dot(w1_ref[...], x.astype(bf16),
                          preferred_element_type=f32) + b1_ref[...])   # (512, TB)
    h2 = _sigmoid(jnp.dot(w2_ref[...], h1.astype(bf16),
                          preferred_element_type=f32) + b2_ref[...])   # (256, TB)

    # prednet_full3 (256 -> 1): VPU multiply + sublane reduce (keeps MXU free),
    # result is naturally the lane-dense (1, TB) row.
    logit = jnp.sum(h2 * w3_ref[...], axis=0, keepdims=True) + b3_ref[...]
    out_ref[...] = _sigmoid(logit)


# ----------------------------------------------------------------------------
# Kernel bodies (fused fc1⊕fc2 for small K, split fallback for production K)
# ----------------------------------------------------------------------------
def target_net_kernel_fused(
    xin_ref,    # (2D, TB) bf16  rows = [ability_x; stu_emb; new_exer; k_diff]
    kpe_ref,    # (K+1, TB) bf16 rows 0..K-1 = knowledge point, row K = raw e_diff
    fcw_ref,    # (2K, 2D) bf16  block-diag [fc1_w 0 ; 0 fc2_w]
    fcb_ref,    # (2K, 1)  f32
    w1_ref, b1_ref, w2_ref, b2_ref, w3_ref, b3_ref,
    out_ref,    # (1, TB)  f32
    *, K,
):
    f32 = jnp.float32
    com = _sigmoid(jnp.dot(fcw_ref[...], xin_ref[...],
                           preferred_element_type=f32) + fcb_ref[...])  # (2K, TB)
    _prednet_tail(com[:K, :], com[K:, :], kpe_ref,
                  w1_ref, b1_ref, w2_ref, b2_ref, w3_ref, b3_ref, out_ref)


def target_net_kernel_split(
    xin1_ref,   # (D, TB) bf16  [ability_x; stu_emb]
    xin2_ref,   # (D, TB) bf16  [new_exer; k_diff]
    kpe_ref,    # (K+1, TB) bf16
    fc1w_ref, fc1b_ref, fc2w_ref, fc2b_ref,
    w1_ref, b1_ref, w2_ref, b2_ref, w3_ref, b3_ref,
    out_ref,    # (1, TB) f32
):
    f32 = jnp.float32
    com_sta = _sigmoid(jnp.dot(fc1w_ref[...], xin1_ref[...],
                               preferred_element_type=f32) + fc1b_ref[...])
    com_kdf = _sigmoid(jnp.dot(fc2w_ref[...], xin2_ref[...],
                               preferred_element_type=f32) + fc2b_ref[...])
    _prednet_tail(com_sta, com_kdf, kpe_ref,
                  w1_ref, b1_ref, w2_ref, b2_ref, w3_ref, b3_ref, out_ref)


# ----------------------------------------------------------------------------
# Parameter-only preprocessing (hoisted out of the per-batch forward).
# ----------------------------------------------------------------------------
def prepare_target_net_params(params, *, mxu_dim=128):
    f32, bf16 = jnp.float32, jnp.bfloat16
    K = params["student_emb"].shape[1]
    PP = params["ability_emb"].shape[1]
    D = PP + K
    # Fuse fc1⊕fc2 into one block-diag MXU pass only while it is free
    # (2K and 2D fit one MXU tile); otherwise two separate dots.
    fuse_fc = (2 * K <= mxu_dim) and (2 * D <= mxu_dim)

    # Transform_Exr: tiny parameter-only MLP -> single (1, PP) exercise vector
    exer_vec = jnp.concatenate([v[None, :] for v in params["s_exer_vectors"]],
                               axis=1)                                  # (1, PP*S)
    h = jax.nn.relu(exer_vec @ params["mlp_w1"].T + params["mlp_b1"])   # (1, 10)
    new_exer = (h @ params["mlp_w2"].T + params["mlp_b2"]).astype(f32)  # (1, PP)

    prep = {
        "K": K, "PP": PP, "D": D, "fuse_fc": fuse_fc,
        "new_exer": new_exer,
        "student_emb": params["student_emb"],
        "ability_emb": params["ability_emb"],
        "k_difficulty": params["k_difficulty"],
        "e_difficulty": params["e_difficulty"],
        # PosLinear transform: 2*relu(-w) + w == |w|.
        "w1": jnp.abs(params["pred1_w"]).astype(bf16),     # (512, K)
        "b1": params["pred1_b"][:, None].astype(f32),      # (512, 1)
        "w2": jnp.abs(params["pred2_w"]).astype(bf16),     # (256, 512)
        "b2": params["pred2_b"][:, None].astype(f32),      # (256, 1)
        "w3": jnp.abs(params["pred3_w"]).T.astype(f32),    # (256, 1)
        "b3": params["pred3_b"][:, None].astype(f32),      # (1, 1)
    }
    if fuse_fc:
        fcw = jnp.zeros((2 * K, 2 * D), f32)
        fcw = fcw.at[:K, :D].set(params["fc1_w"])
        fcw = fcw.at[K:, D:].set(params["fc2_w"])
        prep["fcw"] = fcw.astype(bf16)                     # (2K, 2D)
        prep["fcb"] = jnp.concatenate(
            [params["fc1_b"], params["fc2_b"]])[:, None].astype(f32)   # (2K, 1)
    else:
        prep["fc1w"] = params["fc1_w"].astype(bf16)        # (K, D)
        prep["fc1b"] = params["fc1_b"][:, None].astype(f32)
        prep["fc2w"] = params["fc2_w"].astype(bf16)        # (K, D)
        prep["fc2b"] = params["fc2_b"][:, None].astype(f32)
    return prep


# ----------------------------------------------------------------------------
# Forward: gathers / concat / transpose / pad (glue), then pallas_call.
# ----------------------------------------------------------------------------
def target_net_forward(prep, stu_id, input_exercise, input_knowledge_point,
                       *, tile_b=1024):
    """Full Target_Net forward (eval mode) on prepared parameters."""
    f32, bf16 = jnp.float32, jnp.bfloat16
    B = stu_id.shape[0]
    K, PP, D = prep["K"], prep["PP"], prep["D"]

    # ---- batch tile selection ----
    # lane-aligned, as large as the batch allows (per-step overhead amortized),
    # but split into >=2 tiles when possible so v7x's two TensorCores both work.
    tile_b = max(128, ((int(tile_b) + 127) // 128) * 128)
    b128 = ((B + 127) // 128) * 128
    tile_b = min(tile_b, b128)
    if b128 // tile_b < 2 and b128 >= 256:
        tile_b = ((b128 // 2 + 127) // 128) * 128
    B_pad = ((B + tile_b - 1) // tile_b) * tile_b
    n_tiles = B_pad // tile_b

    # ---- embedding gathers (glue) ----
    stu_emb = jnp.take(prep["student_emb"], stu_id, axis=0)           # (B, K)
    ability_x = jnp.take(prep["ability_emb"], stu_id, axis=0)         # (B, PP)
    k_diff = jnp.take(prep["k_difficulty"], input_exercise, axis=0)   # (B, K)
    e_diff = jnp.take(prep["e_difficulty"], input_exercise, axis=0)   # (B, 1) raw
    new_exer = jnp.broadcast_to(prep["new_exer"], (B, PP))            # (B, PP)

    # feature-major kernel inputs; cast to bf16 BEFORE transpose/pad so the
    # glue moves half the bytes, pad the batch (lane) axis to B_pad.
    def fmaj(a):  # (B, F) f32 -> (F, B_pad) bf16
        a = a.astype(bf16).T
        return jnp.pad(a, ((0, 0), (0, B_pad - B)))

    # knowledge-point mask (rows 0..K-1, exact 0/1 in bf16) + raw e_difficulty
    # (row K) merged into one streamed input.
    kpe = fmaj(jnp.concatenate(
        [input_knowledge_point.astype(f32), e_diff.astype(f32)], axis=1))

    # ---- specs ----
    def tile_spec(feat):   # tile only the batch (lane) axis
        return pl.BlockSpec((feat, tile_b), lambda i: (0, i))

    def full_spec(a):      # whole weight resident in VMEM
        return pl.BlockSpec(a.shape, lambda i: (0, 0))

    common_w = [prep["w1"], prep["b1"], prep["w2"], prep["b2"],
                prep["w3"], prep["b3"]]

    if prep["fuse_fc"]:
        kernel = functools.partial(target_net_kernel_fused, K=K)
        xin = fmaj(jnp.concatenate(
            [ability_x, stu_emb, new_exer, k_diff], axis=1))          # (2D, B_pad)
        inputs = [xin, kpe, prep["fcw"], prep["fcb"], *common_w]
        in_specs = ([tile_spec(2 * D), tile_spec(K + 1),
                     full_spec(prep["fcw"]), full_spec(prep["fcb"])]
                    + [full_spec(w) for w in common_w])
    else:
        kernel = target_net_kernel_split
        xin1 = fmaj(jnp.concatenate([ability_x, stu_emb], axis=1))    # (D, B_pad)
        xin2 = fmaj(jnp.concatenate([new_exer, k_diff], axis=1))      # (D, B_pad)
        inputs = [xin1, xin2, kpe, prep["fc1w"], prep["fc1b"],
                  prep["fc2w"], prep["fc2b"], *common_w]
        in_specs = ([tile_spec(D), tile_spec(D), tile_spec(K + 1),
                     full_spec(prep["fc1w"]), full_spec(prep["fc1b"]),
                     full_spec(prep["fc2w"]), full_spec(prep["fc2b"])]
                    + [full_spec(w) for w in common_w])

    # ---- VMEM budget (streamed tiles double-buffered + resident weights +
    #      f32 intermediates), with 2x headroom; floor at the default 32 MiB,
    #      cap well below v7x's 64 MiB physical VMEM. ----
    vmem_bytes = (
        2 * 2 * (2 * D + (K + 1)) * tile_b          # bf16 input tiles (x2 buf)
        + 2 * 4 * tile_b                            # f32 output row (x2 buf)
        + 2 * (4 * K * D + 512 * K + 256 * 512)     # resident bf16 matmul weights
        + 4 * (4 * K + 512 + 256 + 256 + 2)         # f32 biases + w3
        + 4 * tile_b * (2 * K + K + 512 + 256)      # f32 com / x / h1 / h2
        + 2 * tile_b * (K + 512)                    # bf16 casts of x, h1
    )
    vmem_limit = int(min(max(2 * vmem_bytes, 32 << 20), 48 << 20))

    out = pl.pallas_call(
        kernel,
        out_shape=jax.ShapeDtypeStruct((1, B_pad), f32),
        grid_spec=pltpu.PrefetchScalarGridSpec(
            num_scalar_prefetch=0,
            grid=(n_tiles,),
            in_specs=in_specs,
            out_specs=pl.BlockSpec((1, tile_b), lambda i: (0, i)),
        ),
        # "parallel" lets v7x shard batch tiles across its 2 TensorCores;
        # on v5e/v6e the grid is a serial loop over fat tiles.
        compiler_params=pltpu.CompilerParams(
            dimension_semantics=("parallel",),
            vmem_limit_bytes=vmem_limit),
    )(*inputs)

    return out.reshape(-1)[:B]   # output_1.view(-1)


# ----------------------------------------------------------------------------
# Pure-JAX f32 reference (for correctness check).
# ----------------------------------------------------------------------------
def target_net_reference(params, stu_id, input_exercise, kp):
    stu_emb = jnp.take(params["student_emb"], stu_id, axis=0)
    ability_x = jnp.take(params["ability_emb"], stu_id, axis=0)
    com_sta = jax.nn.sigmoid(
        jnp.concatenate([ability_x, stu_emb], axis=1) @ params["fc1_w"].T
        + params["fc1_b"])
    k_diff = jnp.take(params["k_difficulty"], input_exercise, axis=0)
    exer_vec = jnp.concatenate(
        [v[None, :] for v in params["s_exer_vectors"]], axis=1)
    h = jax.nn.relu(exer_vec @ params["mlp_w1"].T + params["mlp_b1"])
    new_exer = h @ params["mlp_w2"].T + params["mlp_b2"]
    new_exer = jnp.broadcast_to(new_exer, (k_diff.shape[0], new_exer.shape[1]))
    com_kdf = jax.nn.sigmoid(
        jnp.concatenate([new_exer, k_diff], axis=1) @ params["fc2_w"].T
        + params["fc2_b"])
    e_diff = jax.nn.sigmoid(jnp.take(params["e_difficulty"], input_exercise, axis=0))
    x = e_diff * (com_sta - com_kdf) * kp
    h1 = jax.nn.sigmoid(x @ jnp.abs(params["pred1_w"]).T + params["pred1_b"])
    h2 = jax.nn.sigmoid(h1 @ jnp.abs(params["pred2_w"]).T + params["pred2_b"])
    out = jax.nn.sigmoid(h2 @ jnp.abs(params["pred3_w"]).T + params["pred3_b"])
    return out.reshape(-1)


# ----------------------------------------------------------------------------
# Deterministic parameter construction (shapes follow Target_Net.__init__).
# ----------------------------------------------------------------------------
def make_params(key, *, student_n, exer_n, knowledge_n, pp_dim, n_ranges,
                len1=512, len2=256, mlp_hidden=10):
    ks = jax.random.split(key, 16)

    def xavier(k, shape):
        fan_out, fan_in = shape
        std = (2.0 / (fan_in + fan_out)) ** 0.5
        return std * jax.random.normal(k, shape, dtype=jnp.float32)

    params = {
        "student_emb":  xavier(ks[0], (student_n, knowledge_n)),
        "k_difficulty": xavier(ks[1], (exer_n, knowledge_n)),
        "e_difficulty": xavier(ks[2], (exer_n, 1)),
        "ability_emb":  xavier(ks[3], (student_n, pp_dim)),
        "s_exer_vectors": [
            jax.random.uniform(k, (pp_dim,), dtype=jnp.float32)
            for k in jax.random.split(ks[4], n_ranges)
        ],
        "mlp_w1": xavier(ks[5], (mlp_hidden, pp_dim * n_ranges)),
        "mlp_b1": jnp.zeros((mlp_hidden,), jnp.float32),
        "mlp_w2": xavier(ks[6], (pp_dim, mlp_hidden)),
        "mlp_b2": jnp.zeros((pp_dim,), jnp.float32),
        "fc1_w": xavier(ks[7], (knowledge_n, pp_dim + knowledge_n)),
        "fc1_b": jnp.zeros((knowledge_n,), jnp.float32),
        "fc2_w": xavier(ks[8], (knowledge_n, pp_dim + knowledge_n)),
        "fc2_b": jnp.zeros((knowledge_n,), jnp.float32),
        "pred1_w": xavier(ks[9],  (len1, knowledge_n)),
        "pred1_b": jnp.zeros((len1,), jnp.float32),
        "pred2_w": xavier(ks[10], (len2, len1)),
        "pred2_b": jnp.zeros((len2,), jnp.float32),
        "pred3_w": xavier(ks[11], (1, len2)),
        "pred3_b": jnp.zeros((1,), jnp.float32),
    }
    return params


if __name__ == "__main__":
    # small, forward-consistent shapes
    B = 16            # batch
    K = 32            # knowledge_dim (= stu_dim)
    PP = 16           # pp_dim
    STUDENT_N = 20
    EXER_N = 30
    N_RANGES = 3      # len(s_ranges)

    key = jax.random.PRNGKey(0)
    kp_params, k_ids, k_exr, k_kp = jax.random.split(key, 4)

    params = make_params(kp_params, student_n=STUDENT_N, exer_n=EXER_N,
                         knowledge_n=K, pp_dim=PP, n_ranges=N_RANGES)

    stu_id = jax.random.randint(k_ids, (B,), 0, STUDENT_N)
    input_exercise = jax.random.randint(k_exr, (B,), 0, EXER_N)
    input_knowledge_point = (
        jax.random.uniform(k_kp, (B, K)) > 0.5).astype(jnp.float32)

    ref = target_net_reference(params, stu_id, input_exercise,
                               input_knowledge_point)

    # fused fc1⊕fc2 path (2K=64, 2D=96 fit one MXU tile)
    prep = prepare_target_net_params(params)
    out = target_net_forward(prep, stu_id, input_exercise,
                             input_knowledge_point)
    jax.block_until_ready(out)
    assert out.shape == (B,)
    assert bool(jnp.all(jnp.isfinite(out)))
    max_err = float(jnp.max(jnp.abs(out - ref)))
    assert max_err < 2e-2, f"fused path max abs err vs reference: {max_err}"

    # split-fc fallback path (used when 2K/2D exceed one MXU tile at
    # production knowledge_n); force it here to validate both code paths.
    prep_split = prepare_target_net_params(params, mxu_dim=1)
    out_split = target_net_forward(prep_split, stu_id, input_exercise,
                                   input_knowledge_point)
    jax.block_until_ready(out_split)
    max_err_split = float(jnp.max(jnp.abs(out_split - ref)))
    assert max_err_split < 2e-2, \
        f"split path max abs err vs reference: {max_err_split}"

    print("KERNEL_OK")
</pallas_src>

<mosaic_0001>
module attributes {stable_mosaic.version = 11 : i64} {
  func.func @target_net_kernel_fused(%arg0: i32, %arg1: memref<96x128xbf16, #tpu.memory_space<vmem>>, %arg2: memref<33x128xbf16, #tpu.memory_space<vmem>>, %arg3: memref<64x96xbf16, #tpu.memory_space<vmem>>, %arg4: memref<64x1xf32, #tpu.memory_space<vmem>>, %arg5: memref<512x32xbf16, #tpu.memory_space<vmem>>, %arg6: memref<512x1xf32, #tpu.memory_space<vmem>>, %arg7: memref<256x512xbf16, #tpu.memory_space<vmem>>, %arg8: memref<256x1xf32, #tpu.memory_space<vmem>>, %arg9: memref<256x1xf32, #tpu.memory_space<vmem>>, %arg10: memref<1x1xf32, #tpu.memory_space<vmem>>, %arg11: memref<1x128xf32, #tpu.memory_space<vmem>>) attributes {dimension_semantics = [#tpu.dimension_semantics<parallel>], iteration_bounds = array<i64: 1>, scalar_prefetch = 0 : i64, scratch_operands = 0 : i64, tpu.core_type = #tpu.core_type<tc>, window_params = [{transform_indices = @transform_0, window_bounds = array<i64: 96, 128>}, {transform_indices = @transform_1, window_bounds = array<i64: 33, 128>}, {pipeline_mode = #tpu.pipeline_mode<synchronous>, transform_indices = @transform_2, window_bounds = array<i64: 64, 96>}, {pipeline_mode = #tpu.pipeline_mode<synchronous>, transform_indices = @transform_3, window_bounds = array<i64: 64, 1>}, {pipeline_mode = #tpu.pipeline_mode<synchronous>, transform_indices = @transform_4, window_bounds = array<i64: 512, 32>}, {pipeline_mode = #tpu.pipeline_mode<synchronous>, transform_indices = @transform_5, window_bounds = array<i64: 512, 1>}, {pipeline_mode = #tpu.pipeline_mode<synchronous>, transform_indices = @transform_6, window_bounds = array<i64: 256, 512>}, {pipeline_mode = #tpu.pipeline_mode<synchronous>, transform_indices = @transform_7, window_bounds = array<i64: 256, 1>}, {pipeline_mode = #tpu.pipeline_mode<synchronous>, transform_indices = @transform_8, window_bounds = array<i64: 256, 1>}, {pipeline_mode = #tpu.pipeline_mode<synchronous>, transform_indices = @transform_9, window_bounds = array<i64: 1, 1>}, {transform_indices = @transform_10, window_bounds = array<i64: 1, 128>}]} {
    %c0 = arith.constant 0 : index
    %c0_0 = arith.constant 0 : index
    %0 = vector.load %arg3[%c0, %c0_0] : memref<64x96xbf16, #tpu.memory_space<vmem>>, vector<64x96xbf16>
    %c0_1 = arith.constant 0 : index
    %c0_2 = arith.constant 0 : index
    %1 = vector.load %arg1[%c0_1, %c0_2] : memref<96x128xbf16, #tpu.memory_space<vmem>>, vector<96x128xbf16>
    %cst = arith.constant dense<0.000000e+00> : vector<64x128xf32>
    %2 = tpu.matmul %0, %1, %cst {dimension_numbers = #tpu.dot_dimension_numbers<[1], [0], [0], [1], [0, 0, 1, 1], [], []>} : vector<64x96xbf16>, vector<96x128xbf16>, vector<64x128xf32> -> vector<64x128xf32>
    %c0_3 = arith.constant 0 : index
    %c0_4 = arith.constant 0 : index
    %3 = vector.load %arg4[%c0_3, %c0_4] : memref<64x1xf32, #tpu.memory_space<vmem>>, vector<64x1xf32>
    %4 = vector.broadcast %3 : vector<64x1xf32> to vector<64x128xf32>
    %5 = arith.addf %2, %4 : vector<64x128xf32>
    %cst_5 = arith.constant 5.000000e-01 : f32
    %6 = vector.broadcast %cst_5 : f32 to vector<64x128xf32>
    %7 = arith.mulf %6, %5 : vector<64x128xf32>
    %8 = math.tanh %7 : vector<64x128xf32>
    %cst_6 = arith.constant 1.000000e+00 : f32
    %9 = vector.broadcast %cst_6 : f32 to vector<64x128xf32>
    %10 = arith.addf %9, %8 : vector<64x128xf32>
    %cst_7 = arith.constant 5.000000e-01 : f32
    %11 = vector.broadcast %cst_7 : f32 to vector<64x128xf32>
    %12 = arith.mulf %11, %10 : vector<64x128xf32>
    %13 = vector.extract_strided_slice %12 {offsets = [0, 0], sizes = [32, 128], strides = [1, 1]} : vector<64x128xf32> to vector<32x128xf32>
    %14 = vector.extract_strided_slice %12 {offsets = [32, 0], sizes = [32, 128], strides = [1, 1]} : vector<64x128xf32> to vector<32x128xf32>
    %c0_8 = arith.constant 0 : index
    %c0_9 = arith.constant 0 : index
    %15 = vector.load %arg2[%c0_8, %c0_9] : memref<33x128xbf16, #tpu.memory_space<vmem>>, vector<32x128xbf16>
    %16 = arith.extf %15 : vector<32x128xbf16> to vector<32x128xf32>
    %c32 = arith.constant 32 : index
    %c0_10 = arith.constant 0 : index
    %17 = vector.load %arg2[%c32, %c0_10] : memref<33x128xbf16, #tpu.memory_space<vmem>>, vector<1x128xbf16>
    %18 = arith.extf %17 : vector<1x128xbf16> to vector<1x128xf32>
    %cst_11 = arith.constant 5.000000e-01 : f32
    %19 = vector.broadcast %cst_11 : f32 to vector<1x128xf32>
    %20 = arith.mulf %19, %18 : vector<1x128xf32>
    %21 = math.tanh %20 : vector<1x128xf32>
    %cst_12 = arith.constant 1.000000e+00 : f32
    %22 = vector.broadcast %cst_12 : f32 to vector<1x128xf32>
    %23 = arith.addf %22, %21 : vector<1x128xf32>
    %cst_13 = arith.constant 5.000000e-01 : f32
    %24 = vector.broadcast %cst_13 : f32 to vector<1x128xf32>
    %25 = arith.mulf %24, %23 : vector<1x128xf32>
    %26 = arith.subf %13, %14 : vector<32x128xf32>
    %27 = vector.broadcast %25 : vector<1x128xf32> to vector<32x128xf32>
    %28 = arith.mulf %27, %26 : vector<32x128xf32>
    %29 = arith.mulf %28, %16 : vector<32x128xf32>
    %c0_14 = arith.constant 0 : index
    %c0_15 = arith.constant 0 : index
    %30 = vector.load %arg5[%c0_14, %c0_15] : memref<512x32xbf16, #tpu.memory_space<vmem>>, vector<512x32xbf16>
    %31 = arith.truncf %29 : vector<32x128xf32> to vector<32x128xbf16>
    %cst_16 = arith.constant dense<0.000000e+00> : vector<512x128xf32>
    %32 = tpu.matmul %30, %31, %cst_16 {dimension_numbers = #tpu.dot_dimension_numbers<[1], [0], [0], [1], [0, 0, 1, 1], [], []>} : vector<512x32xbf16>, vector<32x128xbf16>, vector<512x128xf32> -> vector<512x128xf32>
    %c0_17 = arith.constant 0 : index
    %c0_18 = arith.constant 0 : index
    %33 = vector.load %arg6[%c0_17, %c0_18] : memref<512x1xf32, #tpu.memory_space<vmem>>, vector<512x1xf32>
    %34 = vector.broadcast %33 : vector<512x1xf32> to vector<512x128xf32>
    %35 = arith.addf %32, %34 : vector<512x128xf32>
    %cst_19 = arith.constant 5.000000e-01 : f32
    %36 = vector.broadcast %cst_19 : f32 to vector<512x128xf32>
    %37 = arith.mulf %36, %35 : vector<512x128xf32>
    %38 = math.tanh %37 : vector<512x128xf32>
    %cst_20 = arith.constant 1.000000e+00 : f32
    %39 = vector.broadcast %cst_20 : f32 to vector<512x128xf32>
    %40 = arith.addf %39, %38 : vector<512x128xf32>
    %cst_21 = arith.constant 5.000000e-01 : f32
    %41 = vector.broadcast %cst_21 : f32 to vector<512x128xf32>
    %42 = arith.mulf %41, %40 : vector<512x128xf32>
    %c0_22 = arith.constant 0 : index
    %c0_23 = arith.constant 0 : index
    %43 = vector.load %arg7[%c0_22, %c0_23] : memref<256x512xbf16, #tpu.memory_space<vmem>>, vector<256x512xbf16>
    %44 = arith.truncf %42 : vector<512x128xf32> to vector<512x128xbf16>
    %cst_24 = arith.constant dense<0.000000e+00> : vector<256x128xf32>
    %45 = tpu.matmul %43, %44, %cst_24 {dimension_numbers = #tpu.dot_dimension_numbers<[1], [0], [0], [1], [0, 0, 1, 1], [], []>} : vector<256x512xbf16>, vector<512x128xbf16>, vector<256x128xf32> -> vector<256x128xf32>
    %c0_25 = arith.constant 0 : index
    %c0_26 = arith.constant 0 : index
    %46 = vector.load %arg8[%c0_25, %c0_26] : memref<256x1xf32, #tpu.memory_space<vmem>>, vector<256x1xf32>
    %47 = vector.broadcast %46 : vector<256x1xf32> to vector<256x128xf32>
    %48 = arith.addf %45, %47 : vector<256x128xf32>
    %cst_27 = arith.constant 5.000000e-01 : f32
    %49 = vector.broadcast %cst_27 : f32 to vector<256x128xf32>
    %50 = arith.mulf %49, %48 : vector<256x128xf32>
    %51 = math.tanh %50 : vector<256x128xf32>
    %cst_28 = arith.constant 1.000000e+00 : f32
    %52 = vector.broadcast %cst_28 : f32 to vector<256x128xf32>
    %53 = arith.addf %52, %51 : vector<256x128xf32>
    %cst_29 = arith.constant 5.000000e-01 : f32
    %54 = vector.broadcast %cst_29 : f32 to vector<256x128xf32>
    %55 = arith.mulf %54, %53 : vector<256x128xf32>
    %c0_30 = arith.constant 0 : index
    %c0_31 = arith.constant 0 : index
    %56 = vector.load %arg9[%c0_30, %c0_31] : memref<256x1xf32, #tpu.memory_space<vmem>>, vector<256x1xf32>
    %57 = vector.broadcast %56 : vector<256x1xf32> to vector<256x128xf32>
    %58 = arith.mulf %55, %57 : vector<256x128xf32>
    %cst_32 = arith.constant dense<0.000000e+00> : vector<128xf32>
    %59 = vector.multi_reduction <add>, %58, %cst_32 [0] : vector<256x128xf32> to vector<128xf32>
    %60 = vector.shape_cast %59 : vector<128xf32> to vector<1x128xf32>
    %c0_33 = arith.constant 0 : index
    %c0_34 = arith.constant 0 : index
    %61 = vector.load %arg10[%c0_33, %c0_34] : memref<1x1xf32, #tpu.memory_space<vmem>>, vector<1x1xf32>
    %62 = vector.broadcast %61 : vector<1x1xf32> to vector<1x128xf32>
    %63 = arith.addf %60, %62 : vector<1x128xf32>
    %cst_35 = arith.constant 5.000000e-01 : f32
    %64 = vector.broadcast %cst_35 : f32 to vector<1x128xf32>
    %65 = arith.mulf %64, %63 : vector<1x128xf32>
    %66 = math.tanh %65 : vector<1x128xf32>
    %cst_36 = arith.constant 1.000000e+00 : f32
    %67 = vector.broadcast %cst_36 : f32 to vector<1x128xf32>
    %68 = arith.addf %67, %66 : vector<1x128xf32>
    %cst_37 = arith.constant 5.000000e-01 : f32
    %69 = vector.broadcast %cst_37 : f32 to vector<1x128xf32>
    %70 = arith.mulf %69, %68 : vector<1x128xf32>
    %c0_38 = arith.constant 0 : index
    %c0_39 = arith.constant 0 : index
    %71 = vector.load %arg11[%c0_38, %c0_39] : memref<1x128xf32, #tpu.memory_space<vmem>>, vector<1x128xf32>
    tpu.vector_store %arg11[%c0_38, %c0_39], %70 {strides = array<i32>} : memref<1x128xf32, #tpu.memory_space<vmem>>, vector<1x128xf32>,
    return
  }
  func.func @transform_0(%arg0: i32) -> (i32, i32) {
    %c0_i32 = arith.constant 0 : i32
    %c0_i32_0 = arith.constant 0 : i32
    return %c0_i32, %arg0 : i32, i32
  }
  func.func @transform_1(%arg0: i32) -> (i32, i32) {
    %c0_i32 = arith.constant 0 : i32
    %c0_i32_0 = arith.constant 0 : i32
    return %c0_i32, %arg0 : i32, i32
  }
  func.func @transform_2(%arg0: i32) -> (i32, i32) {
    %c0_i32 = arith.constant 0 : i32
    %c0_i32_0 = arith.constant 0 : i32
    %c0_i32_1 = arith.constant 0 : i32
    return %c0_i32, %c0_i32_0 : i32, i32
  }
  func.func @transform_3(%arg0: i32) -> (i32, i32) {
    %c0_i32 = arith.constant 0 : i32
    %c0_i32_0 = arith.constant 0 : i32
    %c0_i32_1 = arith.constant 0 : i32
    return %c0_i32, %c0_i32_0 : i32, i32
  }
  func.func @transform_4(%arg0: i32) -> (i32, i32) {
    %c0_i32 = arith.constant 0 : i32
    %c0_i32_0 = arith.constant 0 : i32
    %c0_i32_1 = arith.constant 0 : i32
    return %c0_i32, %c0_i32_0 : i32, i32
  }
  func.func @transform_5(%arg0: i32) -> (i32, i32) {
    %c0_i32 = arith.constant 0 : i32
    %c0_i32_0 = arith.constant 0 : i32
    %c0_i32_1 = arith.constant 0 : i32
    return %c0_i32, %c0_i32_0 : i32, i32
  }
  func.func @transform_6(%arg0: i32) -> (i32, i32) {
    %c0_i32 = arith.constant 0 : i32
    %c0_i32_0 = arith.constant 0 : i32
    %c0_i32_1 = arith.constant 0 : i32
    return %c0_i32, %c0_i32_0 : i32, i32
  }
  func.func @transform_7(%arg0: i32) -> (i32, i32) {
    %c0_i32 = arith.constant 0 : i32
    %c0_i32_0 = arith.constant 0 : i32
    %c0_i32_1 = arith.constant 0 : i32
    return %c0_i32, %c0_i32_0 : i32, i32
  }
  func.func @transform_8(%arg0: i32) -> (i32, i32) {
    %c0_i32 = arith.constant 0 : i32
    %c0_i32_0 = arith.constant 0 : i32
    %c0_i32_1 = arith.constant 0 : i32
    return %c0_i32, %c0_i32_0 : i32, i32
  }
  func.func @transform_9(%arg0: i32) -> (i32, i32) {
    %c0_i32 = arith.constant 0 : i32
    %c0_i32_0 = arith.constant 0 : i32
    %c0_i32_1 = arith.constant 0 : i32
    return %c0_i32, %c0_i32_0 : i32, i32
  }
  func.func @transform_10(%arg0: i32) -> (i32, i32) {
    %c0_i32 = arith.constant 0 : i32
    %c0_i32_0 = arith.constant 0 : i32
    return %c0_i32, %arg0 : i32, i32
  }
}

</mosaic_0001>

<llo_original>
// kernel: tpu_custom_call.1
$region0: #{tpu_custom_call.1}
  #allocation0 [shape = 'u32[]', space=smem, size = 0x4, offset = 0x4, fixed_abs, tag = 'smem constant byte address 0x4 - core index']
  #allocation1 [shape = 'u32[72,128]{1,0:T(1,128)}', space=vmem, size = 0x9000, scoped, tag = 'internal scratch']
  #allocation2 [shape = 'f32[1,1]{1,0:T(1,128)S(1)}', space=vmem, size = 0x200, scoped, tag = 'scoped memory for tpu_custom_call.1']
  %s0 = inlined_call_operand.vmem [shape: bf16[96,128], index: 0, kind: input, shape index: {}]
  %s1 = inlined_call_operand.vmem [shape: bf16[33,128], index: 1, kind: input, shape index: {}]
  %s2 = inlined_call_operand.vmem [shape: bf16[64,96], index: 2, kind: input, shape index: {}]
  %s3 = inlined_call_operand.vmem [shape: f32[64,1], index: 3, kind: input, shape index: {}]
  %s4 = inlined_call_operand.vmem [shape: bf16[512,32], index: 4, kind: input, shape index: {}]
  %s5 = inlined_call_operand.vmem [shape: f32[512,1], index: 5, kind: input, shape index: {}]
  %s6 = inlined_call_operand.vmem [shape: bf16[256,512], index: 6, kind: input, shape index: {}]
  %s7 = inlined_call_operand.vmem [shape: f32[256,1], index: 7, kind: input, shape index: {}]
  %s8 = inlined_call_operand.vmem [shape: f32[256,1], index: 8, kind: input, shape index: {}]
  %s9 = inlined_call_operand.<no memory space> [shape: f32[1,1], index: 9, kind: input, shape index: {}]
  %s10 = inlined_call_operand.hbm [shape: f32[1,128], index: 10, kind: output, shape index: {}]
  %s11 = sld [smem:[#allocation0]]
  $region50: #{tpu_custom_call.1} parent=0
    _
  %s13 = ssub.s32 1, %s11
  %s14 = scalar_select 0, %s13, %s11
  %v15 = vstv %s9
  %16 = vst [vmem:[#allocation2] sm:$0x1] %v15
  $region1: #{tpu_custom_call.1} parent=0
    #allocation3 [shape = 'u8[512]{0}', space=vmem, size = 0x400, scoped, tag = 'output window, operand 0, single buffered']
    #allocation4 [shape = 's32[1]{0}', space=sflag, size = 0x4, scoped, tag = 'scoped memory for tpu_custom_call.1']
    %17 = vsyncpa [#allocation4], 0
    // Predicated region
    $region2: #{tpu_custom_call.1} parent=1 // pred_check
      _
    $region3: #{tpu_custom_call.1} parent=1 // pred_check_branch
      %19 = sbr.rel (0) target = $region5
    $region4: #{tpu_custom_call.1} parent=1 // pred_region
      _
    $region5: #{tpu_custom_call.1} parent=1 // pred_fallthru
      _
    // Predicated region
    $region6: #{tpu_custom_call.1} parent=1 // pred_check
      _
    $region7: #{tpu_custom_call.1} parent=1 // pred_check_branch
      %21 = sbr.rel (0) target = $region9
    $region8: #{tpu_custom_call.1} parent=1 // pred_region
      _
    $region9: #{tpu_custom_call.1} parent=1 // pred_fallthru
      _
    // Predicated region
    $region10: #{tpu_custom_call.1} parent=1 // pred_check
      _
    $region11: #{tpu_custom_call.1} parent=1 // pred_check_branch
      %23 = sbr.rel (0) target = $region13
    $region12: #{tpu_custom_call.1} parent=1 // pred_region
      _
    $region13: #{tpu_custom_call.1} parent=1 // pred_fallthru
      _
    // Predicated region
    $region14: #{tpu_custom_call.1} parent=1 // pred_check
      _
    $region15: #{tpu_custom_call.1} parent=1 // pred_check_branch
      %25 = sbr.rel (0) target = $region17
    $region16: #{tpu_custom_call.1} parent=1 // pred_region
      _
    $region17: #{tpu_custom_call.1} parent=1 // pred_fallthru
      _
    // Predicated region
    $region18: #{tpu_custom_call.1} parent=1 // pred_check
      _
    $region19: #{tpu_custom_call.1} parent=1 // pred_check_branch
      %27 = sbr.rel (0) target = $region21
    $region20: #{tpu_custom_call.1} parent=1 // pred_region
      _
    $region21: #{tpu_custom_call.1} parent=1 // pred_fallthru
      _
    // Predicated region
    $region22: #{tpu_custom_call.1} parent=1 // pred_check
      _
    $region23: #{tpu_custom_call.1} parent=1 // pred_check_branch
      %29 = sbr.rel (0) target = $region25
    $region24: #{tpu_custom_call.1} parent=1 // pred_region
      _
    $region25: #{tpu_custom_call.1} parent=1 // pred_fallthru
      _
    // Predicated region
    $region26: #{tpu_custom_call.1} parent=1 // pred_check
      _
    $region27: #{tpu_custom_call.1} parent=1 // pred_check_branch
      %31 = sbr.rel (0) target = $region29
    $region28: #{tpu_custom_call.1} parent=1 // pred_region
      _
    $region29: #{tpu_custom_call.1} parent=1 // pred_fallthru
      _
    // Predicated region
    $region30: #{tpu_custom_call.1} parent=1 // pred_check
      _
    $region31: #{tpu_custom_call.1} parent=1 // pred_check_branch
      %33 = sbr.rel (0) target = $region33
    $region32: #{tpu_custom_call.1} parent=1 // pred_region
      _
    $region33: #{tpu_custom_call.1} parent=1 // pred_fallthru
      _
    // Predicated region
    $region34: #{tpu_custom_call.1} parent=1 // pred_check
      _
    $region35: #{tpu_custom_call.1} parent=1 // pred_check_branch
      %35 = sbr.rel (0) target = $region37
    $region36: #{tpu_custom_call.1} parent=1 // pred_region
      _
    $region37: #{tpu_custom_call.1} parent=1 // pred_fallthru
      _
    // Predicated region
    $region38: #{tpu_custom_call.1} parent=1 // pred_check
      _
    $region39: #{tpu_custom_call.1} parent=1 // pred_check_branch
      %37 = sbr.rel (0) target = $region41
    $region40: #{tpu_custom_call.1} parent=1 // pred_region
      _
    $region41: #{tpu_custom_call.1} parent=1 // pred_fallthru
      _
    %v39 = vld [vmem:[%s2] sm:$0xf]
    %v40 = vld [vmem:[%s2 + $0x4] sm:$0xf]
    %v41 = vld [vmem:[%s2 + $0x8] sm:$0xf]
    %v42 = vld [vmem:[%s2 + $0xc] sm:$0xf]
    %v43 = vld [vmem:[%s2 + $0x10] sm:$0xf]
    %v44 = vld [vmem:[%s2 + $0x14] sm:$0xf]
    %v45 = vld [vmem:[%s2 + $0x18] sm:$0xf]
    %v46 = vld [vmem:[%s2 + $0x1c] sm:$0xf]
    %v47 = vld [vmem:[%s0] sm:$0xf]
    %v48 = vld [vmem:[%s0 + $0x4] sm:$0xf]
    %v49 = vld [vmem:[%s0 + $0x8] sm:$0xf]
    %v50 = vld [vmem:[%s0 + $0xc] sm:$0xf]
    %v51 = vld [vmem:[%s0 + $0x10] sm:$0xf]
    %v52 = vld [vmem:[%s0 + $0x14] sm:$0xf]
    %v53 = vld [vmem:[%s0 + $0x18] sm:$0xf]
    %v54 = vld [vmem:[%s0 + $0x1c] sm:$0xf]
    %v55 = vld [vmem:[%s0 + $0x20] sm:$0xf]
    %v56 = vld [vmem:[%s0 + $0x24] sm:$0xf]
    %v57 = vld [vmem:[%s0 + $0x28] sm:$0xf]
    %v58 = vld [vmem:[%s0 + $0x2c] sm:$0xf]
    %v59 = vld [vmem:[%s3] sm:$0xff]
    %v60 = vld [vmem:[%s3 + $0x8] sm:$0xff]
    %v61 = vld [vmem:[%s3 + $0x10] sm:$0xff]
    %v62 = vld [vmem:[%s3 + $0x18] sm:$0xff]
    %v63 = vld [vmem:[%s3 + $0x20] sm:$0xff]
    %v64 = vld [vmem:[%s3 + $0x28] sm:$0xff]
    %v65 = vld [vmem:[%s3 + $0x30] sm:$0xff]
    %v66 = vld [vmem:[%s3 + $0x38] sm:$0xff]
    %68 = vset.pattern.permute.xlu0 0
    %69 = vperm.xlu0 %68, %v59
    %v70 = vpop.permute.xlu0 %69
    %73 = vset.pattern.permute.xlu0 0
    %74 = vperm.xlu0 %73, %v60
    %v75 = vpop.permute.xlu0 %74
    %78 = vset.pattern.permute.xlu0 0
    %79 = vperm.xlu0 %78, %v61
    %v80 = vpop.permute.xlu0 %79
    %83 = vset.pattern.permute.xlu0 0
    %84 = vperm.xlu0 %83, %v62
    %v85 = vpop.permute.xlu0 %84
    %88 = vset.pattern.permute.xlu0 0
    %89 = vperm.xlu0 %88, %v63
    %v90 = vpop.permute.xlu0 %89
    %93 = vset.pattern.permute.xlu0 0
    %94 = vperm.xlu0 %93, %v64
    %v95 = vpop.permute.xlu0 %94
    %98 = vset.pattern.permute.xlu0 0
    %99 = vperm.xlu0 %98, %v65
    %v100 = vpop.permute.xlu0 %99
    %103 = vset.pattern.permute.xlu0 0
    %104 = vperm.xlu0 %103, %v66
    %v105 = vpop.permute.xlu0 %104
    %v115 = vunpack.c.l.b16 %v39
    %v116 = vunpack.c.l.b16 %v40
    %v117 = vunpack.c.l.b16 %v41
    %v118 = vunpack.c.l.b16 %v42
    %v119 = vunpack.c.l.b16 %v43
    %v120 = vunpack.c.l.b16 %v44
    %v121 = vunpack.c.l.b16 %v45
    %v122 = vunpack.c.l.b16 %v46
    %v123 = vpack.c.b16 %v116, %v115
    %v124 = vpack.c.b16 %v118, %v117
    %v125 = vpack.c.b16 %v120, %v119
    %v126 = vpack.c.b16 %v122, %v121
    %v139 = vunpack.c.l.b16 %v47
    %v140 = vunpack.c.l.b16 %v48
    %v141 = vunpack.c.l.b16 %v49
    %v142 = vunpack.c.l.b16 %v50
    %v143 = vunpack.c.l.b16 %v51
    %v144 = vunpack.c.l.b16 %v52
    %v145 = vunpack.c.l.b16 %v53
    %v146 = vunpack.c.l.b16 %v54
    %v147 = vunpack.c.l.b16 %v55
    %v148 = vunpack.c.l.b16 %v56
    %v149 = vunpack.c.l.b16 %v57
    %v150 = vunpack.c.l.b16 %v58
    %v151 = vpack.c.b16 %v140, %v139
    %v152 = vpack.c.b16 %v142, %v141
    %v153 = vpack.c.b16 %v144, %v143
    %v154 = vpack.c.b16 %v146, %v145
    %v155 = vpack.c.b16 %v148, %v147
    %v156 = vpack.c.b16 %v150, %v149
    %vm163 = vcmask 785408
    %v165 = vsel %vm163, %v123, 0
    %v168 = vsel %vm163, %v124, 0
    %v171 = vsel %vm163, %v125, 0
    %v174 = vsel %vm163, %v126, 0
    %176 = vmatpush.bf16.msra.mxu0 0
    %177 = vmatpush.bf16.msra.mxu0 0
    %178 = vmatpush.bf16.msra.mxu0 %v156
    %179 = vmatpush.bf16.msra.mxu0 %v155
    %180 = vmatpush.bf16.msra.mxu0 %v154
    %181 = vmatpush.bf16.msra.mxu0 %v153
    %182 = vmatpush.bf16.msra.mxu0 %v152
    %183 = vmatpush.bf16.msra.mxu0 %v151
    %184 = vmatmul.bf16.gmra.mxu0 %v165
    %v185 = vpop.f32.mrf.mxu0
    %v186 = vadd.f32 %v70, %v185
    %v187 = vpop.f32.mrf.mxu0
    %v188 = vadd.f32 %v75, %v187
    %189 = vmatmul.bf16.gmra.mxu0 %v168
    %v190 = vpop.f32.mrf.mxu0
    %v191 = vadd.f32 %v80, %v190
    %v192 = vpop.f32.mrf.mxu0
    %v193 = vadd.f32 %v85, %v192
    %194 = vmatmul.bf16.gmra.mxu0 %v171
    %v195 = vpop.f32.mrf.mxu0
    %v196 = vadd.f32 %v90, %v195
    %v197 = vpop.f32.mrf.mxu0
    %v198 = vadd.f32 %v95, %v197
    %199 = vmatmul.bf16.gmra.mxu0 %v174
    %v200 = vpop.f32.mrf.mxu0
    %v201 = vadd.f32 %v100, %v200
    %v202 = vpop.f32.mrf.mxu0
    %v203 = vadd.f32 %v105, %v202
    %204 = vdwg.mxu0
    %v205 = vmul.f32 %v186, 0.5
    %v206 = vmul.f32 %v188, 0.5
    %v207 = vmul.f32 %v191, 0.5
    %v208 = vmul.f32 %v193, 0.5
    %v209 = vmul.f32 %v196, 0.5
    %v210 = vmul.f32 %v198, 0.5
    %v211 = vmul.f32 %v201, 0.5
    %v212 = vmul.f32 %v203, 0.5
    %v213 = vtanh.pop %v205
    %v214 = vtanh.pop %v206
    %v215 = vtanh.pop %v207
    %v216 = vtanh.pop %v208
    %v217 = vtanh.pop %v209
    %v218 = vtanh.pop %v210
    %v219 = vtanh.pop %v211
    %v220 = vtanh.pop %v212
    %v221 = vadd.f32 %v213, 1.0
    %v222 = vadd.f32 %v214, 1.0
    %v223 = vadd.f32 %v215, 1.0
    %v224 = vadd.f32 %v216, 1.0
    %v225 = vadd.f32 %v217, 1.0
    %v226 = vadd.f32 %v218, 1.0
    %v227 = vadd.f32 %v219, 1.0
    %v228 = vadd.f32 %v220, 1.0
    %v229 = vmul.f32 %v221, 0.5
    %v230 = vmul.f32 %v222, 0.5
    %v231 = vmul.f32 %v223, 0.5
    %v232 = vmul.f32 %v224, 0.5
    %v233 = vmul.f32 %v225, 0.5
    %v234 = vmul.f32 %v226, 0.5
    %v235 = vmul.f32 %v227, 0.5
    %v236 = vmul.f32 %v228, 0.5
    %v237 = vld [vmem:[%s1] sm:$0xf]
    %v238 = vld [vmem:[%s1 + $0x4] sm:$0xf]
    %v239 = vld [vmem:[%s1 + $0x8] sm:$0xf]
    %v240 = vld [vmem:[%s1 + $0xc] sm:$0xf]
    %v241 = vunpack.c.l.bf16 %v237
    %v242 = vunpack.c.l.bf16 %v238
    %v243 = vunpack.c.l.bf16 %v239
    %v244 = vunpack.c.l.bf16 %v240
    %v245 = vld [vmem:[%s1 + $0x10] sm:$0x1]
    %v246 = vunpack.c.l.bf16 %v245
    %v247 = vmul.f32 %v246, 0.5
    %v248 = vtanh.pop %v247
    %v249 = vadd.f32 %v248, 1.0
    %v250 = vmul.f32 %v249, 0.5
    %v251 = vsub.f32 %v229, %v233
    %v252 = vsub.f32 %v230, %v234
    %v253 = vsub.f32 %v231, %v235
    %v254 = vsub.f32 %v232, %v236
    %v255 = vperm.slane %v250, 0
    %v256 = vmul.f32 %v255, %v251
    %v257 = vmul.f32 %v255, %v252
    %v258 = vmul.f32 %v255, %v253
    %v259 = vmul.f32 %v255, %v254
    %v260 = vmul.f32 %v256, %v241
    %v261 = vmul.f32 %v257, %v242
    %v262 = vmul.f32 %v258, %v243
    %v263 = vmul.f32 %v259, %v244
    %v264 = vld [vmem:[%s4] sm:$0xf]
    %v265 = vld [vmem:[%s4 + $0x4] sm:$0xf]
    %v266 = vld [vmem:[%s4 + $0x8] sm:$0xf]
    %v267 = vld [vmem:[%s4 + $0xc] sm:$0xf]
    %v268 = vld [vmem:[%s4 + $0x10] sm:$0xf]
    %v269 = vld [vmem:[%s4 + $0x14] sm:$0xf]
    %v270 = vld [vmem:[%s4 + $0x18] sm:$0xf]
    %v271 = vld [vmem:[%s4 + $0x1c] sm:$0xf]
    %v272 = vld [vmem:[%s4 + $0x20] sm:$0xf]
    %v273 = vld [vmem:[%s4 + $0x24] sm:$0xf]
    %v274 = vld [vmem:[%s4 + $0x28] sm:$0xf]
    %v275 = vld [vmem:[%s4 + $0x2c] sm:$0xf]
    %v276 = vld [vmem:[%s4 + $0x30] sm:$0xf]
    %v277 = vld [vmem:[%s4 + $0x34] sm:$0xf]
    %v278 = vld [vmem:[%s4 + $0x38] sm:$0xf]
    %v279 = vld [vmem:[%s4 + $0x3c] sm:$0xf]
    %v280 = vld [vmem:[%s4 + $0x40] sm:$0xf]
    %v281 = vld [vmem:[%s4 + $0x44] sm:$0xf]
    %v282 = vld [vmem:[%s4 + $0x48] sm:$0xf]
    %v283 = vld [vmem:[%s4 + $0x4c] sm:$0xf]
    %v284 = vld [vmem:[%s4 + $0x50] sm:$0xf]
    %v285 = vld [vmem:[%s4 + $0x54] sm:$0xf]
    %v286 = vld [vmem:[%s4 + $0x58] sm:$0xf]
    %v287 = vld [vmem:[%s4 + $0x5c] sm:$0xf]
    %v288 = vld [vmem:[%s4 + $0x60] sm:$0xf]
    %v289 = vld [vmem:[%s4 + $0x64] sm:$0xf]
    %v290 = vld [vmem:[%s4 + $0x68] sm:$0xf]
    %v291 = vld [vmem:[%s4 + $0x6c] sm:$0xf]
    %v292 = vld [vmem:[%s4 + $0x70] sm:$0xf]
    %v293 = vld [vmem:[%s4 + $0x74] sm:$0xf]
    %v294 = vld [vmem:[%s4 + $0x78] sm:$0xf]
    %v295 = vld [vmem:[%s4 + $0x7c] sm:$0xf]
    %v296 = vld [vmem:[%s4 + $0x80] sm:$0xf]
    %v297 = vld [vmem:[%s4 + $0x84] sm:$0xf]
    %v298 = vld [vmem:[%s4 + $0x88] sm:$0xf]
    %v299 = vld [vmem:[%s4 + $0x8c] sm:$0xf]
    %v300 = vld [vmem:[%s4 + $0x90] sm:$0xf]
    %v301 = vld [vmem:[%s4 + $0x94] sm:$0xf]
    %v302 = vld [vmem:[%s4 + $0x98] sm:$0xf]
    %v303 = vld [vmem:[%s4 + $0x9c] sm:$0xf]
    %v304 = vld [vmem:[%s4 + $0xa0] sm:$0xf]
    %v305 = vld [vmem:[%s4 + $0xa4] sm:$0xf]
    %v306 = vld [vmem:[%s4 + $0xa8] sm:$0xf]
    %v307 = vld [vmem:[%s4 + $0xac] sm:$0xf]
    %v308 = vld [vmem:[%s4 + $0xb0] sm:$0xf]
    %v309 = vld [vmem:[%s4 + $0xb4] sm:$0xf]
    %v310 = vld [vmem:[%s4 + $0xb8] sm:$0xf]
    %v311 = vld [vmem:[%s4 + $0xbc] sm:$0xf]
    %v312 = vld [vmem:[%s4 + $0xc0] sm:$0xf]
    %v313 = vld [vmem:[%s4 + $0xc4] sm:$0xf]
    %v314 = vld [vmem:[%s4 + $0xc8] sm:$0xf]
    %v315 = vld [vmem:[%s4 + $0xcc] sm:$0xf]
    %v316 = vld [vmem:[%s4 + $0xd0] sm:$0xf]
    %v317 = vld [vmem:[%s4 + $0xd4] sm:$0xf]
    %v318 = vld [vmem:[%s4 + $0xd8] sm:$0xf]
    %v319 = vld [vmem:[%s4 + $0xdc] sm:$0xf]
    %v320 = vld [vmem:[%s4 + $0xe0] sm:$0xf]
    %v321 = vld [vmem:[%s4 + $0xe4] sm:$0xf]
    %v322 = vld [vmem:[%s4 + $0xe8] sm:$0xf]
    %v323 = vld [vmem:[%s4 + $0xec] sm:$0xf]
    %v324 = vld [vmem:[%s4 + $0xf0] sm:$0xf]
    %v325 = vld [vmem:[%s4 + $0xf4] sm:$0xf]
    %v326 = vld [vmem:[%s4 + $0xf8] sm:$0xf]
    %v327 = vld [vmem:[%s4 + $0xfc] sm:$0xf]
    %v328 = vpack.c.bf16 %v261, %v260
    %v329 = vpack.c.bf16 %v263, %v262
    %v330 = vld [vmem:[%s5] sm:$0xff]
    %v331 = vld [vmem:[%s5 + $0x8] sm:$0xff]
    %v332 = vld [vmem:[%s5 + $0x10] sm:$0xff]
    %v333 = vld [vmem:[%s5 + $0x18] sm:$0xff]
    %v334 = vld [vmem:[%s5 + $0x20] sm:$0xff]
    %v335 = vld [vmem:[%s5 + $0x28] sm:$0xff]
    %v336 = vld [vmem:[%s5 + $0x30] sm:$0xff]
    %v337 = vld [vmem:[%s5 + $0x38] sm:$0xff]
    %v338 = vld [vmem:[%s5 + $0x40] sm:$0xff]
    %v339 = vld [vmem:[%s5 + $0x48] sm:$0xff]
    %v340 = vld [vmem:[%s5 + $0x50] sm:$0xff]
    %v341 = vld [vmem:[%s5 + $0x58] sm:$0xff]
    %v342 = vld [vmem:[%s5 + $0x60] sm:$0xff]
    %v343 = vld [vmem:[%s5 + $0x68] sm:$0xff]
    %v344 = vld [vmem:[%s5 + $0x70] sm:$0xff]
    %v345 = vld [vmem:[%s5 + $0x78] sm:$0xff]
    %v346 = vld [vmem:[%s5 + $0x80] sm:$0xff]
    %v347 = vld [vmem:[%s5 + $0x88] sm:$0xff]
    %v348 = vld [vmem:[%s5 + $0x90] sm:$0xff]
    %v349 = vld [vmem:[%s5 + $0x98] sm:$0xff]
    %v350 = vld [vmem:[%s5 + $0xa0] sm:$0xff]
    %v351 = vld [vmem:[%s5 + $0xa8] sm:$0xff]
    %v352 = vld [vmem:[%s5 + $0xb0] sm:$0xff]
    %v353 = vld [vmem:[%s5 + $0xb8] sm:$0xff]
    %v354 = vld [vmem:[%s5 + $0xc0] sm:$0xff]
    %v355 = vld [vmem:[%s5 + $0xc8] sm:$0xff]
    %v356 = vld [vmem:[%s5 + $0xd0] sm:$0xff]
    %v357 = vld [vmem:[%s5 + $0xd8] sm:$0xff]
    %v358 = vld [vmem:[%s5 + $0xe0] sm:$0xff]
    %v359 = vld [vmem:[%s5 + $0xe8] sm:$0xff]
    %v360 = vld [vmem:[%s5 + $0xf0] sm:$0xff]
    %v361 = vld [vmem:[%s5 + $0xf8] sm:$0xff]
    %v362 = vld [vmem:[%s5 + $0x100] sm:$0xff]
    %v363 = vld [vmem:[%s5 + $0x108] sm:$0xff]
    %v364 = vld [vmem:[%s5 + $0x110] sm:$0xff]
    %v365 = vld [vmem:[%s5 + $0x118] sm:$0xff]
    %v366 = vld [vmem:[%s5 + $0x120] sm:$0xff]
    %v367 = vld [vmem:[%s5 + $0x128] sm:$0xff]
    %v368 = vld [vmem:[%s5 + $0x130] sm:$0xff]
    %v369 = vld [vmem:[%s5 + $0x138] sm:$0xff]
    %v370 = vld [vmem:[%s5 + $0x140] sm:$0xff]
    %v371 = vld [vmem:[%s5 + $0x148] sm:$0xff]
    %v372 = vld [vmem:[%s5 + $0x150] sm:$0xff]
    %v373 = vld [vmem:[%s5 + $0x158] sm:$0xff]
    %v374 = vld [vmem:[%s5 + $0x160] sm:$0xff]
    %v375 = vld [vmem:[%s5 + $0x168] sm:$0xff]
    %v376 = vld [vmem:[%s5 + $0x170] sm:$0xff]
    %v377 = vld [vmem:[%s5 + $0x178] sm:$0xff]
    %v378 = vld [vmem:[%s5 + $0x180] sm:$0xff]
    %v379 = vld [vmem:[%s5 + $0x188] sm:$0xff]
    %v380 = vld [vmem:[%s5 + $0x190] sm:$0xff]
    %v381 = vld [vmem:[%s5 + $0x198] sm:$0xff]
    %v382 = vld [vmem:[%s5 + $0x1a0] sm:$0xff]
    %v383 = vld [vmem:[%s5 + $0x1a8] sm:$0xff]
    %v384 = vld [vmem:[%s5 + $0x1b0] sm:$0xff]
    %v385 = vld [vmem:[%s5 + $0x1b8] sm:$0xff]
    %v386 = vld [vmem:[%s5 + $0x1c0] sm:$0xff]
    %v387 = vld [vmem:[%s5 + $0x1c8] sm:$0xff]
    %v388 = vld [vmem:[%s5 + $0x1d0] sm:$0xff]
    %v389 = vld [vmem:[%s5 + $0x1d8] sm:$0xff]
    %v390 = vld [vmem:[%s5 + $0x1e0] sm:$0xff]
    %v391 = vld [vmem:[%s5 + $0x1e8] sm:$0xff]
    %v392 = vld [vmem:[%s5 + $0x1f0] sm:$0xff]
    %v393 = vld [vmem:[%s5 + $0x1f8] sm:$0xff]
    %395 = vset.pattern.permute.xlu0 0
    %396 = vperm.xlu0 %395, %v330
    %v397 = vpop.permute.xlu0 %396
    %400 = vset.pattern.permute.xlu0 0
    %401 = vperm.xlu0 %400, %v331
    %v402 = vpop.permute.xlu0 %401
    %405 = vset.pattern.permute.xlu0 0
    %406 = vperm.xlu0 %405, %v332
    %v407 = vpop.permute.xlu0 %406
    %410 = vset.pattern.permute.xlu0 0
    %411 = vperm.xlu0 %410, %v333
    %v412 = vpop.permute.xlu0 %411
    %415 = vset.pattern.permute.xlu0 0
    %416 = vperm.xlu0 %415, %v334
    %v417 = vpop.permute.xlu0 %416
    %420 = vset.pattern.permute.xlu0 0
    %421 = vperm.xlu0 %420, %v335
    %v422 = vpop.permute.xlu0 %421
    %425 = vset.pattern.permute.xlu0 0
    %426 = vperm.xlu0 %425, %v336
    %v427 = vpop.permute.xlu0 %426
    %430 = vset.pattern.permute.xlu0 0
    %431 = vperm.xlu0 %430, %v337
    %v432 = vpop.permute.xlu0 %431
    %435 = vset.pattern.permute.xlu0 0
    %436 = vperm.xlu0 %435, %v338
    %v437 = vpop.permute.xlu0 %436
    %440 = vset.pattern.permute.xlu0 0
    %441 = vperm.xlu0 %440, %v339
    %v442 = vpop.permute.xlu0 %441
    %445 = vset.pattern.permute.xlu0 0
    %446 = vperm.xlu0 %445, %v340
    %v447 = vpop.permute.xlu0 %446
    %450 = vset.pattern.permute.xlu0 0
    %451 = vperm.xlu0 %450, %v341
    %v452 = vpop.permute.xlu0 %451
    %455 = vset.pattern.permute.xlu0 0
    %456 = vperm.xlu0 %455, %v342
    %v457 = vpop.permute.xlu0 %456
    %460 = vset.pattern.permute.xlu0 0
    %461 = vperm.xlu0 %460, %v343
    %v462 = vpop.permute.xlu0 %461
    %465 = vset.pattern.permute.xlu0 0
    %466 = vperm.xlu0 %465, %v344
    %v467 = vpop.permute.xlu0 %466
    %470 = vset.pattern.permute.xlu0 0
    %471 = vperm.xlu0 %470, %v345
    %v472 = vpop.permute.xlu0 %471
    %475 = vset.pattern.permute.xlu0 0
    %476 = vperm.xlu0 %475, %v346
    %v477 = vpop.permute.xlu0 %476
    %480 = vset.pattern.permute.xlu0 0
    %481 = vperm.xlu0 %480, %v347
    %v482 = vpop.permute.xlu0 %481
    %485 = vset.pattern.permute.xlu0 0
    %486 = vperm.xlu0 %485, %v348
    %v487 = vpop.permute.xlu0 %486
    %490 = vset.pattern.permute.xlu0 0
    %491 = vperm.xlu0 %490, %v349
    %v492 = vpop.permute.xlu0 %491
    %495 = vset.pattern.permute.xlu0 0
    %496 = vperm.xlu0 %495, %v350
    %v497 = vpop.permute.xlu0 %496
    %500 = vset.pattern.permute.xlu0 0
    %501 = vperm.xlu0 %500, %v351
    %v502 = vpop.permute.xlu0 %501
    %505 = vset.pattern.permute.xlu0 0
    %506 = vperm.xlu0 %505, %v352
    %v507 = vpop.permute.xlu0 %506
    %510 = vset.pattern.permute.xlu0 0
    %511 = vperm.xlu0 %510, %v353
    %v512 = vpop.permute.xlu0 %511
    %515 = vset.pattern.permute.xlu0 0
    %516 = vperm.xlu0 %515, %v354
    %v517 = vpop.permute.xlu0 %516
    %520 = vset.pattern.permute.xlu0 0
    %521 = vperm.xlu0 %520, %v355
    %v522 = vpop.permute.xlu0 %521
    %525 = vset.pattern.permute.xlu0 0
    %526 = vperm.xlu0 %525, %v356
    %v527 = vpop.permute.xlu0 %526
    %530 = vset.pattern.permute.xlu0 0
    %531 = vperm.xlu0 %530, %v357
    %v532 = vpop.permute.xlu0 %531
    %535 = vset.pattern.permute.xlu0 0
    %536 = vperm.xlu0 %535, %v358
    %v537 = vpop.permute.xlu0 %536
    %540 = vset.pattern.permute.xlu0 0
    %541 = vperm.xlu0 %540, %v359
    %v542 = vpop.permute.xlu0 %541
    %545 = vset.pattern.permute.xlu0 0
    %546 = vperm.xlu0 %545, %v360
    %v547 = vpop.permute.xlu0 %546
    %550 = vset.pattern.permute.xlu0 0
    %551 = vperm.xlu0 %550, %v361
    %v552 = vpop.permute.xlu0 %551
    %555 = vset.pattern.permute.xlu0 0
    %556 = vperm.xlu0 %555, %v362
    %v557 = vpop.permute.xlu0 %556
    %560 = vset.pattern.permute.xlu0 0
    %561 = vperm.xlu0 %560, %v363
    %v562 = vpop.permute.xlu0 %561
    %565 = vset.pattern.permute.xlu0 0
    %566 = vperm.xlu0 %565, %v364
    %v567 = vpop.permute.xlu0 %566
    %570 = vset.pattern.permute.xlu0 0
    %571 = vperm.xlu0 %570, %v365
    %v572 = vpop.permute.xlu0 %571
    %575 = vset.pattern.permute.xlu0 0
    %576 = vperm.xlu0 %575, %v366
    %v577 = vpop.permute.xlu0 %576
    %580 = vset.pattern.permute.xlu0 0
    %581 = vperm.xlu0 %580, %v367
    %v582 = vpop.permute.xlu0 %581
    %585 = vset.pattern.permute.xlu0 0
    %586 = vperm.xlu0 %585, %v368
    %v587 = vpop.permute.xlu0 %586
    %590 = vset.pattern.permute.xlu0 0
    %591 = vperm.xlu0 %590, %v369
    %v592 = vpop.permute.xlu0 %591
    %595 = vset.pattern.permute.xlu0 0
    %596 = vperm.xlu0 %595, %v370
    %v597 = vpop.permute.xlu0 %596
    %600 = vset.pattern.permute.xlu0 0
    %601 = vperm.xlu0 %600, %v371
    %v602 = vpop.permute.xlu0 %601
    %605 = vset.pattern.permute.xlu0 0
    %606 = vperm.xlu0 %605, %v372
    %v607 = vpop.permute.xlu0 %606
    %610 = vset.pattern.permute.xlu0 0
    %611 = vperm.xlu0 %610, %v373
    %v612 = vpop.permute.xlu0 %611
    %615 = vset.pattern.permute.xlu0 0
    %616 = vperm.xlu0 %615, %v374
    %v617 = vpop.permute.xlu0 %616
    %620 = vset.pattern.permute.xlu0 0
    %621 = vperm.xlu0 %620, %v375
    %v622 = vpop.permute.xlu0 %621
    %625 = vset.pattern.permute.xlu0 0
    %626 = vperm.xlu0 %625, %v376
    %v627 = vpop.permute.xlu0 %626
    %630 = vset.pattern.permute.xlu0 0
    %631 = vperm.xlu0 %630, %v377
    %v632 = vpop.permute.xlu0 %631
    %635 = vset.pattern.permute.xlu0 0
    %636 = vperm.xlu0 %635, %v378
    %v637 = vpop.permute.xlu0 %636
    %640 = vset.pattern.permute.xlu0 0
    %641 = vperm.xlu0 %640, %v379
    %v642 = vpop.permute.xlu0 %641
    %645 = vset.pattern.permute.xlu0 0
    %646 = vperm.xlu0 %645, %v380
    %v647 = vpop.permute.xlu0 %646
    %650 = vset.pattern.permute.xlu0 0
    %651 = vperm.xlu0 %650, %v381
    %v652 = vpop.permute.xlu0 %651
    %655 = vset.pattern.permute.xlu0 0
    %656 = vperm.xlu0 %655, %v382
    %v657 = vpop.permute.xlu0 %656
    %660 = vset.pattern.permute.xlu0 0
    %661 = vperm.xlu0 %660, %v383
    %v662 = vpop.permute.xlu0 %661
    %665 = vset.pattern.permute.xlu0 0
    %666 = vperm.xlu0 %665, %v384
    %v667 = vpop.permute.xlu0 %666
    %670 = vset.pattern.permute.xlu0 0
    %671 = vperm.xlu0 %670, %v385
    %v672 = vpop.permute.xlu0 %671
    %675 = vset.pattern.permute.xlu0 0
    %676 = vperm.xlu0 %675, %v386
    %v677 = vpop.permute.xlu0 %676
    %680 = vset.pattern.permute.xlu0 0
    %681 = vperm.xlu0 %680, %v387
    %v682 = vpop.permute.xlu0 %681
    %685 = vset.pattern.permute.xlu0 0
    %686 = vperm.xlu0 %685, %v388
    %v687 = vpop.permute.xlu0 %686
    %690 = vset.pattern.permute.xlu0 0
    %691 = vperm.xlu0 %690, %v389
    %v692 = vpop.permute.xlu0 %691
    %695 = vset.pattern.permute.xlu0 0
    %696 = vperm.xlu0 %695, %v390
    %v697 = vpop.permute.xlu0 %696
    %700 = vset.pattern.permute.xlu0 0
    %701 = vperm.xlu0 %700, %v391
    %v702 = vpop.permute.xlu0 %701
    %705 = vset.pattern.permute.xlu0 0
    %706 = vperm.xlu0 %705, %v392
    %v707 = vpop.permute.xlu0 %706
    %710 = vset.pattern.permute.xlu0 0
    %711 = vperm.xlu0 %710, %v393
    %v712 = vpop.permute.xlu0 %711
    %v778 = vunpack.c.l.b16 %v264
    %v779 = vunpack.c.l.b16 %v265
    %v780 = vunpack.c.l.b16 %v266
    %v781 = vunpack.c.l.b16 %v267
    %v782 = vunpack.c.l.b16 %v268
    %v783 = vunpack.c.l.b16 %v269
    %v784 = vunpack.c.l.b16 %v270
    %v785 = vunpack.c.l.b16 %v271
    %v786 = vunpack.c.l.b16 %v272
    %v787 = vunpack.c.l.b16 %v273
    %v788 = vunpack.c.l.b16 %v274
    %v789 = vunpack.c.l.b16 %v275
    %v790 = vunpack.c.l.b16 %v276
    %v791 = vunpack.c.l.b16 %v277
    %v792 = vunpack.c.l.b16 %v278
    %v793 = vunpack.c.l.b16 %v279
    %v794 = vunpack.c.l.b16 %v280
    %v795 = vunpack.c.l.b16 %v281
    %v796 = vunpack.c.l.b16 %v282
    %v797 = vunpack.c.l.b16 %v283
    %v798 = vunpack.c.l.b16 %v284
    %v799 = vunpack.c.l.b16 %v285
    %v800 = vunpack.c.l.b16 %v286
    %v801 = vunpack.c.l.b16 %v287
    %v802 = vunpack.c.l.b16 %v288
    %v803 = vunpack.c.l.b16 %v289
    %v804 = vunpack.c.l.b16 %v290
    %v805 = vunpack.c.l.b16 %v291
    %v806 = vunpack.c.l.b16 %v292
    %v807 = vunpack.c.l.b16 %v293
    %v808 = vunpack.c.l.b16 %v294
    %v809 = vunpack.c.l.b16 %v295
    %v810 = vunpack.c.l.b16 %v296
    %v811 = vunpack.c.l.b16 %v297
    %v812 = vunpack.c.l.b16 %v298
    %v813 = vunpack.c.l.b16 %v299
    %v814 = vunpack.c.l.b16 %v300
    %v815 = vunpack.c.l.b16 %v301
    %v816 = vunpack.c.l.b16 %v302
    %v817 = vunpack.c.l.b16 %v303
    %v818 = vunpack.c.l.b16 %v304
    %v819 = vunpack.c.l.b16 %v305
    %v820 = vunpack.c.l.b16 %v306
    %v821 = vunpack.c.l.b16 %v307
    %v822 = vunpack.c.l.b16 %v308
    %v823 = vunpack.c.l.b16 %v309
    %v824 = vunpack.c.l.b16 %v310
    %v825 = vunpack.c.l.b16 %v311
    %v826 = vunpack.c.l.b16 %v312
    %v827 = vunpack.c.l.b16 %v313
    %v828 = vunpack.c.l.b16 %v314
    %v829 = vunpack.c.l.b16 %v315
    %v830 = vunpack.c.l.b16 %v316
    %v831 = vunpack.c.l.b16 %v317
    %v832 = vunpack.c.l.b16 %v318
    %v833 = vunpack.c.l.b16 %v319
    %v834 = vunpack.c.l.b16 %v320
    %v835 = vunpack.c.l.b16 %v321
    %v836 = vunpack.c.l.b16 %v322
    %v837 = vunpack.c.l.b16 %v323
    %v838 = vunpack.c.l.b16 %v324
    %v839 = vunpack.c.l.b16 %v325
    %v840 = vunpack.c.l.b16 %v326
    %v841 = vunpack.c.l.b16 %v327
    %v842 = vpack.c.b16 %v779, %v778
    %v843 = vpack.c.b16 %v781, %v780
    %v844 = vpack.c.b16 %v783, %v782
    %v845 = vpack.c.b16 %v785, %v784
    %v846 = vpack.c.b16 %v787, %v786
    %v847 = vpack.c.b16 %v789, %v788
    %v848 = vpack.c.b16 %v791, %v790
    %v849 = vpack.c.b16 %v793, %v792
    %v850 = vpack.c.b16 %v795, %v794
    %v851 = vpack.c.b16 %v797, %v796
    %v852 = vpack.c.b16 %v799, %v798
    %v853 = vpack.c.b16 %v801, %v800
    %v854 = vpack.c.b16 %v803, %v802
    %v855 = vpack.c.b16 %v805, %v804
    %v856 = vpack.c.b16 %v807, %v806
    %v857 = vpack.c.b16 %v809, %v808
    %v858 = vpack.c.b16 %v811, %v810
    %v859 = vpack.c.b16 %v813, %v812
    %v860 = vpack.c.b16 %v815, %v814
    %v861 = vpack.c.b16 %v817, %v816
    %v862 = vpack.c.b16 %v819, %v818
    %v863 = vpack.c.b16 %v821, %v820
    %v864 = vpack.c.b16 %v823, %v822
    %v865 = vpack.c.b16 %v825, %v824
    %v866 = vpack.c.b16 %v827, %v826
    %v867 = vpack.c.b16 %v829, %v828
    %v868 = vpack.c.b16 %v831, %v830
    %v869 = vpack.c.b16 %v833, %v832
    %v870 = vpack.c.b16 %v835, %v834
    %v871 = vpack.c.b16 %v837, %v836
    %v872 = vpack.c.b16 %v839, %v838
    %v873 = vpack.c.b16 %v841, %v840
    %vm874 = vcmask 261120
    %v876 = vsel %vm874, %v842, 0
    %v879 = vsel %vm874, %v843, 0
    %v882 = vsel %vm874, %v844, 0
    %v885 = vsel %vm874, %v845, 0
    %v888 = vsel %vm874, %v846, 0
    %v891 = vsel %vm874, %v847, 0
    %v894 = vsel %vm874, %v848, 0
    %v897 = vsel %vm874, %v849, 0
    %v900 = vsel %vm874, %v850, 0
    %v903 = vsel %vm874, %v851, 0
    %v906 = vsel %vm874, %v852, 0
    %v909 = vsel %vm874, %v853, 0
    %v912 = vsel %vm874, %v854, 0
    %v915 = vsel %vm874, %v855, 0
    %v918 = vsel %vm874, %v856, 0
    %v921 = vsel %vm874, %v857, 0
    %v924 = vsel %vm874, %v858, 0
    %v927 = vsel %vm874, %v859, 0
    %v930 = vsel %vm874, %v860, 0
    %v933 = vsel %vm874, %v861, 0
    %v936 = vsel %vm874, %v862, 0
    %v939 = vsel %vm874, %v863, 0
    %v942 = vsel %vm874, %v864, 0
    %v945 = vsel %vm874, %v865, 0
    %v948 = vsel %vm874, %v866, 0
    %v951 = vsel %vm874, %v867, 0
    %v954 = vsel %vm874, %v868, 0
    %v957 = vsel %vm874, %v869, 0
    %v960 = vsel %vm874, %v870, 0
    %v963 = vsel %vm874, %v871, 0
    %v966 = vsel %vm874, %v872, 0
    %v969 = vsel %vm874, %v873, 0
    %971 = vmatpush.bf16.msra.mxu0 0
    %972 = vmatpush.bf16.msra.mxu0 0
    %973 = vmatpush.bf16.msra.mxu0 0
    %974 = vmatpush.bf16.msra.mxu0 0
    %975 = vmatpush.bf16.msra.mxu0 0
    %976 = vmatpush.bf16.msra.mxu0 0
    %977 = vmatpush.bf16.msra.mxu0 %v329
    %978 = vmatpush.bf16.msra.mxu0 %v328
    %979 = vmatmul.bf16.gmra.mxu0 %v876
    %v980 = vpop.f32.mrf.mxu0
    %v981 = vadd.f32 %v397, %v980
    %v982 = vpop.f32.mrf.mxu0
    %v983 = vadd.f32 %v402, %v982
    %984 = vmatmul.bf16.gmra.mxu0 %v879
    %v985 = vpop.f32.mrf.mxu0
    %v986 = vadd.f32 %v407, %v985
    %v987 = vpop.f32.mrf.mxu0
    %v988 = vadd.f32 %v412, %v987
    %989 = vmatmul.bf16.gmra.mxu0 %v882
    %v990 = vpop.f32.mrf.mxu0
    %v991 = vadd.f32 %v417, %v990
    %v992 = vpop.f32.mrf.mxu0
    %v993 = vadd.f32 %v422, %v992
    %994 = vmatmul.bf16.gmra.mxu0 %v885
    %v995 = vpop.f32.mrf.mxu0
    %v996 = vadd.f32 %v427, %v995
    %v997 = vpop.f32.mrf.mxu0
    %v998 = vadd.f32 %v432, %v997
    %999 = vmatmul.bf16.gmra.mxu0 %v888
    %v1000 = vpop.f32.mrf.mxu0
    %v1001 = vadd.f32 %v437, %v1000
    %v1002 = vpop.f32.mrf.mxu0
    %v1003 = vadd.f32 %v442, %v1002
    %1004 = vmatmul.bf16.gmra.mxu0 %v891
    %v1005 = vpop.f32.mrf.mxu0
    %v1006 = vadd.f32 %v447, %v1005
    %v1007 = vpop.f32.mrf.mxu0
    %v1008 = vadd.f32 %v452, %v1007
    %1009 = vmatmul.bf16.gmra.mxu0 %v894
    %v1010 = vpop.f32.mrf.mxu0
    %v1011 = vadd.f32 %v457, %v1010
    %v1012 = vpop.f32.mrf.mxu0
    %v1013 = vadd.f32 %v462, %v1012
    %1014 = vmatmul.bf16.gmra.mxu0 %v897
    %v1015 = vpop.f32.mrf.mxu0
    %v1016 = vadd.f32 %v467, %v1015
    %v1017 = vpop.f32.mrf.mxu0
    %v1018 = vadd.f32 %v472, %v1017
    %1019 = vmatmul.bf16.gmra.mxu0 %v900
    %v1020 = vpop.f32.mrf.mxu0
    %v1021 = vadd.f32 %v477, %v1020
    %v1022 = vpop.f32.mrf.mxu0
    %v1023 = vadd.f32 %v482, %v1022
    %1024 = vmatmul.bf16.gmra.mxu0 %v903
    %v1025 = vpop.f32.mrf.mxu0
    %v1026 = vadd.f32 %v487, %v1025
    %v1027 = vpop.f32.mrf.mxu0
    %v1028 = vadd.f32 %v492, %v1027
    %1029 = vmatmul.bf16.gmra.mxu0 %v906
    %v1030 = vpop.f32.mrf.mxu0
    %v1031 = vadd.f32 %v497, %v1030
    %v1032 = vpop.f32.mrf.mxu0
    %v1033 = vadd.f32 %v502, %v1032
    %1034 = vmatmul.bf16.gmra.mxu0 %v909
    %v1035 = vpop.f32.mrf.mxu0
    %v1036 = vadd.f32 %v507, %v1035
    %v1037 = vpop.f32.mrf.mxu0
    %v1038 = vadd.f32 %v512, %v1037
    %1039 = vmatmul.bf16.gmra.mxu0 %v912
    %v1040 = vpop.f32.mrf.mxu0
    %v1041 = vadd.f32 %v517, %v1040
    %v1042 = vpop.f32.mrf.mxu0
    %v1043 = vadd.f32 %v522, %v1042
    %1044 = vmatmul.bf16.gmra.mxu0 %v915
    %v1045 = vpop.f32.mrf.mxu0
    %v1046 = vadd.f32 %v527, %v1045
    %v1047 = vpop.f32.mrf.mxu0
    %v1048 = vadd.f32 %v532, %v1047
    %1049 = vmatmul.bf16.gmra.mxu0 %v918
    %v1050 = vpop.f32.mrf.mxu0
    %v1051 = vadd.f32 %v537, %v1050
    %v1052 = vpop.f32.mrf.mxu0
    %v1053 = vadd.f32 %v542, %v1052
    %1054 = vmatmul.bf16.gmra.mxu0 %v921
    %v1055 = vpop.f32.mrf.mxu0
    %v1056 = vadd.f32 %v547, %v1055
    %v1057 = vpop.f32.mrf.mxu0
    %v1058 = vadd.f32 %v552, %v1057
    %1059 = vmatmul.bf16.gmra.mxu0 %v924
    %v1060 = vpop.f32.mrf.mxu0
    %v1061 = vadd.f32 %v557, %v1060
    %v1062 = vpop.f32.mrf.mxu0
    %v1063 = vadd.f32 %v562, %v1062
    %1064 = vmatmul.bf16.gmra.mxu0 %v927
    %v1065 = vpop.f32.mrf.mxu0
    %v1066 = vadd.f32 %v567, %v1065
    %v1067 = vpop.f32.mrf.mxu0
    %v1068 = vadd.f32 %v572, %v1067
    %1069 = vmatmul.bf16.gmra.mxu0 %v930
    %v1070 = vpop.f32.mrf.mxu0
    %v1071 = vadd.f32 %v577, %v1070
    %v1072 = vpop.f32.mrf.mxu0
    %v1073 = vadd.f32 %v582, %v1072
    %1074 = vmatmul.bf16.gmra.mxu0 %v933
    %v1075 = vpop.f32.mrf.mxu0
    %v1076 = vadd.f32 %v587, %v1075
    %v1077 = vpop.f32.mrf.mxu0
    %v1078 = vadd.f32 %v592, %v1077
    %1079 = vmatmul.bf16.gmra.mxu0 %v936
    %v1080 = vpop.f32.mrf.mxu0
    %v1081 = vadd.f32 %v597, %v1080
    %v1082 = vpop.f32.mrf.mxu0
    %v1083 = vadd.f32 %v602, %v1082
    %1084 = vmatmul.bf16.gmra.mxu0 %v939
    %v1085 = vpop.f32.mrf.mxu0
    %v1086 = vadd.f32 %v607, %v1085
    %v1087 = vpop.f32.mrf.mxu0
    %v1088 = vadd.f32 %v612, %v1087
    %1089 = vmatmul.bf16.gmra.mxu0 %v942
    %v1090 = vpop.f32.mrf.mxu0
    %v1091 = vadd.f32 %v617, %v1090
    %v1092 = vpop.f32.mrf.mxu0
    %v1093 = vadd.f32 %v622, %v1092
    %1094 = vmatmul.bf16.gmra.mxu0 %v945
    %v1095 = vpop.f32.mrf.mxu0
    %v1096 = vadd.f32 %v627, %v1095
    %v1097 = vpop.f32.mrf.mxu0
    %v1098 = vadd.f32 %v632, %v1097
    %1099 = vmatmul.bf16.gmra.mxu0 %v948
    %v1100 = vpop.f32.mrf.mxu0
    %v1101 = vadd.f32 %v637, %v1100
    %v1102 = vpop.f32.mrf.mxu0
    %v1103 = vadd.f32 %v642, %v1102
    %1104 = vmatmul.bf16.gmra.mxu0 %v951
    %v1105 = vpop.f32.mrf.mxu0
    %v1106 = vadd.f32 %v647, %v1105
    %v1107 = vpop.f32.mrf.mxu0
    %v1108 = vadd.f32 %v652, %v1107
    %1109 = vmatmul.bf16.gmra.mxu0 %v954
    %v1110 = vpop.f32.mrf.mxu0
    %v1111 = vadd.f32 %v657, %v1110
    %v1112 = vpop.f32.mrf.mxu0
    %v1113 = vadd.f32 %v662, %v1112
    %1114 = vmatmul.bf16.gmra.mxu0 %v957
    %v1115 = vpop.f32.mrf.mxu0
    %v1116 = vadd.f32 %v667, %v1115
    %v1117 = vpop.f32.mrf.mxu0
    %v1118 = vadd.f32 %v672, %v1117
    %1119 = vmatmul.bf16.gmra.mxu0 %v960
    %v1120 = vpop.f32.mrf.mxu0
    %v1121 = vadd.f32 %v677, %v1120
    %v1122 = vpop.f32.mrf.mxu0
    %v1123 = vadd.f32 %v682, %v1122
    %1124 = vmatmul.bf16.gmra.mxu0 %v963
    %v1125 = vpop.f32.mrf.mxu0
    %v1126 = vadd.f32 %v687, %v1125
    %v1127 = vpop.f32.mrf.mxu0
    %v1128 = vadd.f32 %v692, %v1127
    %1129 = vmatmul.bf16.gmra.mxu0 %v966
    %v1130 = vpop.f32.mrf.mxu0
    %v1131 = vadd.f32 %v697, %v1130
    %v1132 = vpop.f32.mrf.mxu0
    %v1133 = vadd.f32 %v702, %v1132
    %1134 = vmatmul.bf16.gmra.mxu0 %v969
    %v1135 = vpop.f32.mrf.mxu0
    %v1136 = vadd.f32 %v707, %v1135
    %v1137 = vpop.f32.mrf.mxu0
    %v1138 = vadd.f32 %v712, %v1137
    %1139 = vdwg.mxu0
    %v1140 = vmul.f32 %v981, 0.5
    %v1141 = vmul.f32 %v983, 0.5
    %v1142 = vmul.f32 %v986, 0.5
    %v1143 = vmul.f32 %v988, 0.5
    %v1144 = vmul.f32 %v991, 0.5
    %v1145 = vmul.f32 %v993, 0.5
    %v1146 = vmul.f32 %v996, 0.5
    %v1147 = vmul.f32 %v998, 0.5
    %v1148 = vmul.f32 %v1001, 0.5
    %v1149 = vmul.f32 %v1003, 0.5
    %v1150 = vmul.f32 %v1006, 0.5
    %v1151 = vmul.f32 %v1008, 0.5
    %v1152 = vmul.f32 %v1011, 0.5
    %v1153 = vmul.f32 %v1013, 0.5
    %v1154 = vmul.f32 %v1016, 0.5
    %v1155 = vmul.f32 %v1018, 0.5
    %v1156 = vmul.f32 %v1021, 0.5
    %v1157 = vmul.f32 %v1023, 0.5
    %v1158 = vmul.f32 %v1026, 0.5
    %v1159 = vmul.f32 %v1028, 0.5
    %v1160 = vmul.f32 %v1031, 0.5
    %v1161 = vmul.f32 %v1033, 0.5
    %v1162 = vmul.f32 %v1036, 0.5
    %v1163 = vmul.f32 %v1038, 0.5
    %v1164 = vmul.f32 %v1041, 0.5
    %v1165 = vmul.f32 %v1043, 0.5
    %v1166 = vmul.f32 %v1046, 0.5
    %v1167 = vmul.f32 %v1048, 0.5
    %v1168 = vmul.f32 %v1051, 0.5
    %v1169 = vmul.f32 %v1053, 0.5
    %v1170 = vmul.f32 %v1056, 0.5
    %v1171 = vmul.f32 %v1058, 0.5
    %v1172 = vmul.f32 %v1061, 0.5
    %v1173 = vmul.f32 %v1063, 0.5
    %v1174 = vmul.f32 %v1066, 0.5
    %v1175 = vmul.f32 %v1068, 0.5
    %v1176 = vmul.f32 %v1071, 0.5
    %v1177 = vmul.f32 %v1073, 0.5
    %v1178 = vmul.f32 %v1076, 0.5
    %v1179 = vmul.f32 %v1078, 0.5
    %v1180 = vmul.f32 %v1081, 0.5
    %v1181 = vmul.f32 %v1083, 0.5
    %v1182 = vmul.f32 %v1086, 0.5
    %v1183 = vmul.f32 %v1088, 0.5
    %v1184 = vmul.f32 %v1091, 0.5
    %v1185 = vmul.f32 %v1093, 0.5
    %v1186 = vmul.f32 %v1096, 0.5
    %v1187 = vmul.f32 %v1098, 0.5
    %v1188 = vmul.f32 %v1101, 0.5
    %v1189 = vmul.f32 %v1103, 0.5
    %v1190 = vmul.f32 %v1106, 0.5
    %v1191 = vmul.f32 %v1108, 0.5
    %v1192 = vmul.f32 %v1111, 0.5
    %v1193 = vmul.f32 %v1113, 0.5
    %v1194 = vmul.f32 %v1116, 0.5
    %v1195 = vmul.f32 %v1118, 0.5
    %v1196 = vmul.f32 %v1121, 0.5
    %v1197 = vmul.f32 %v1123, 0.5
    %v1198 = vmul.f32 %v1126, 0.5
    %v1199 = vmul.f32 %v1128, 0.5
    %v1200 = vmul.f32 %v1131, 0.5
    %v1201 = vmul.f32 %v1133, 0.5
    %v1202 = vmul.f32 %v1136, 0.5
    %v1203 = vmul.f32 %v1138, 0.5
    %v1204 = vtanh.pop %v1140
    %v1205 = vtanh.pop %v1141
    %v1206 = vtanh.pop %v1142
    %v1207 = vtanh.pop %v1143
    %v1208 = vtanh.pop %v1144
    %v1209 = vtanh.pop %v1145
    %v1210 = vtanh.pop %v1146
    %v1211 = vtanh.pop %v1147
    %v1212 = vtanh.pop %v1148
    %v1213 = vtanh.pop %v1149
    %v1214 = vtanh.pop %v1150
    %v1215 = vtanh.pop %v1151
    %v1216 = vtanh.pop %v1152
    %v1217 = vtanh.pop %v1153
    %v1218 = vtanh.pop %v1154
    %v1219 = vtanh.pop %v1155
    %v1220 = vtanh.pop %v1156
    %v1221 = vtanh.pop %v1157
    %v1222 = vtanh.pop %v1158
    %v1223 = vtanh.pop %v1159
    %v1224 = vtanh.pop %v1160
    %v1225 = vtanh.pop %v1161
    %v1226 = vtanh.pop %v1162
    %v1227 = vtanh.pop %v1163
    %v1228 = vtanh.pop %v1164
    %v1229 = vtanh.pop %v1165
    %v1230 = vtanh.pop %v1166
    %v1231 = vtanh.pop %v1167
    %v1232 = vtanh.pop %v1168
    %v1233 = vtanh.pop %v1169
    %v1234 = vtanh.pop %v1170
    %v1235 = vtanh.pop %v1171
    %v1236 = vtanh.pop %v1172
    %v1237 = vtanh.pop %v1173
    %v1238 = vtanh.pop %v1174
    %v1239 = vtanh.pop %v1175
    %v1240 = vtanh.pop %v1176
    %v1241 = vtanh.pop %v1177
    %v1242 = vtanh.pop %v1178
    %v1243 = vtanh.pop %v1179
    %v1244 = vtanh.pop %v1180
    %v1245 = vtanh.pop %v1181
    %v1246 = vtanh.pop %v1182
    %v1247 = vtanh.pop %v1183
    %v1248 = vtanh.pop %v1184
    %v1249 = vtanh.pop %v1185
    %v1250 = vtanh.pop %v1186
    %v1251 = vtanh.pop %v1187
    %v1252 = vtanh.pop %v1188
    %v1253 = vtanh.pop %v1189
    %v1254 = vtanh.pop %v1190
    %v1255 = vtanh.pop %v1191
    %v1256 = vtanh.pop %v1192
    %v1257 = vtanh.pop %v1193
    %v1258 = vtanh.pop %v1194
    %v1259 = vtanh.pop %v1195
    %v1260 = vtanh.pop %v1196
    %v1261 = vtanh.pop %v1197
    %v1262 = vtanh.pop %v1198
    %v1263 = vtanh.pop %v1199
    %v1264 = vtanh.pop %v1200
    %v1265 = vtanh.pop %v1201
    %v1266 = vtanh.pop %v1202
    %v1267 = vtanh.pop %v1203
    %v1268 = vadd.f32 %v1204, 1.0
    %v1269 = vadd.f32 %v1205, 1.0
    %v1270 = vadd.f32 %v1206, 1.0
    %v1271 = vadd.f32 %v1207, 1.0
    %v1272 = vadd.f32 %v1208, 1.0
    %v1273 = vadd.f32 %v1209, 1.0
    %v1274 = vadd.f32 %v1210, 1.0
    %v1275 = vadd.f32 %v1211, 1.0
    %v1276 = vadd.f32 %v1212, 1.0
    %v1277 = vadd.f32 %v1213, 1.0
    %v1278 = vadd.f32 %v1214, 1.0
    %v1279 = vadd.f32 %v1215, 1.0
    %v1280 = vadd.f32 %v1216, 1.0
    %v1281 = vadd.f32 %v1217, 1.0
    %v1282 = vadd.f32 %v1218, 1.0
    %v1283 = vadd.f32 %v1219, 1.0
    %v1284 = vadd.f32 %v1220, 1.0
    %v1285 = vadd.f32 %v1221, 1.0
    %v1286 = vadd.f32 %v1222, 1.0
    %v1287 = vadd.f32 %v1223, 1.0
    %v1288 = vadd.f32 %v1224, 1.0
    %v1289 = vadd.f32 %v1225, 1.0
    %v1290 = vadd.f32 %v1226, 1.0
    %v1291 = vadd.f32 %v1227, 1.0
    %v1292 = vadd.f32 %v1228, 1.0
    %v1293 = vadd.f32 %v1229, 1.0
    %v1294 = vadd.f32 %v1230, 1.0
    %v1295 = vadd.f32 %v1231, 1.0
    %v1296 = vadd.f32 %v1232, 1.0
    %v1297 = vadd.f32 %v1233, 1.0
    %v1298 = vadd.f32 %v1234, 1.0
    %v1299 = vadd.f32 %v1235, 1.0
    %v1300 = vadd.f32 %v1236, 1.0
    %v1301 = vadd.f32 %v1237, 1.0
    %v1302 = vadd.f32 %v1238, 1.0
    %v1303 = vadd.f32 %v1239, 1.0
    %v1304 = vadd.f32 %v1240, 1.0
    %v1305 = vadd.f32 %v1241, 1.0
    %v1306 = vadd.f32 %v1242, 1.0
    %v1307 = vadd.f32 %v1243, 1.0
    %v1308 = vadd.f32 %v1244, 1.0
    %v1309 = vadd.f32 %v1245, 1.0
    %v1310 = vadd.f32 %v1246, 1.0
    %v1311 = vadd.f32 %v1247, 1.0
    %v1312 = vadd.f32 %v1248, 1.0
    %v1313 = vadd.f32 %v1249, 1.0
    %v1314 = vadd.f32 %v1250, 1.0
    %v1315 = vadd.f32 %v1251, 1.0
    %v1316 = vadd.f32 %v1252, 1.0
    %v1317 = vadd.f32 %v1253, 1.0
    %v1318 = vadd.f32 %v1254, 1.0
    %v1319 = vadd.f32 %v1255, 1.0
    %v1320 = vadd.f32 %v1256, 1.0
    %v1321 = vadd.f32 %v1257, 1.0
    %v1322 = vadd.f32 %v1258, 1.0
    %v1323 = vadd.f32 %v1259, 1.0
    %v1324 = vadd.f32 %v1260, 1.0
    %v1325 = vadd.f32 %v1261, 1.0
    %v1326 = vadd.f32 %v1262, 1.0
    %v1327 = vadd.f32 %v1263, 1.0
    %v1328 = vadd.f32 %v1264, 1.0
    %v1329 = vadd.f32 %v1265, 1.0
    %v1330 = vadd.f32 %v1266, 1.0
    %v1331 = vadd.f32 %v1267, 1.0
    %v1332 = vmul.f32 %v1268, 0.5
    %v1333 = vmul.f32 %v1269, 0.5
    %v1334 = vmul.f32 %v1270, 0.5
    %v1335 = vmul.f32 %v1271, 0.5
    %v1336 = vmul.f32 %v1272, 0.5
    %v1337 = vmul.f32 %v1273, 0.5
    %v1338 = vmul.f32 %v1274, 0.5
    %v1339 = vmul.f32 %v1275, 0.5
    %v1340 = vmul.f32 %v1276, 0.5
    %v1341 = vmul.f32 %v1277, 0.5
    %v1342 = vmul.f32 %v1278, 0.5
    %v1343 = vmul.f32 %v1279, 0.5
    %v1344 = vmul.f32 %v1280, 0.5
    %v1345 = vmul.f32 %v1281, 0.5
    %v1346 = vmul.f32 %v1282, 0.5
    %v1347 = vmul.f32 %v1283, 0.5
    %v1348 = vmul.f32 %v1284, 0.5
    %v1349 = vmul.f32 %v1285, 0.5
    %v1350 = vmul.f32 %v1286, 0.5
    %v1351 = vmul.f32 %v1287, 0.5
    %v1352 = vmul.f32 %v1288, 0.5
    %v1353 = vmul.f32 %v1289, 0.5
    %v1354 = vmul.f32 %v1290, 0.5
    %v1355 = vmul.f32 %v1291, 0.5
    %v1356 = vmul.f32 %v1292, 0.5
    %v1357 = vmul.f32 %v1293, 0.5
    %v1358 = vmul.f32 %v1294, 0.5
    %v1359 = vmul.f32 %v1295, 0.5
    %v1360 = vmul.f32 %v1296, 0.5
    %v1361 = vmul.f32 %v1297, 0.5
    %v1362 = vmul.f32 %v1298, 0.5
    %v1363 = vmul.f32 %v1299, 0.5
    %v1364 = vmul.f32 %v1300, 0.5
    %v1365 = vmul.f32 %v1301, 0.5
    %v1366 = vmul.f32 %v1302, 0.5
    %v1367 = vmul.f32 %v1303, 0.5
    %v1368 = vmul.f32 %v1304, 0.5
    %v1369 = vmul.f32 %v1305, 0.5
    %v1370 = vmul.f32 %v1306, 0.5
    %v1371 = vmul.f32 %v1307, 0.5
    %v1372 = vmul.f32 %v1308, 0.5
    %v1373 = vmul.f32 %v1309, 0.5
    %v1374 = vmul.f32 %v1310, 0.5
    %v1375 = vmul.f32 %v1311, 0.5
    %v1376 = vmul.f32 %v1312, 0.5
    %v1377 = vmul.f32 %v1313, 0.5
    %v1378 = vmul.f32 %v1314, 0.5
    %v1379 = vmul.f32 %v1315, 0.5
    %v1380 = vmul.f32 %v1316, 0.5
    %v1381 = vmul.f32 %v1317, 0.5
    %v1382 = vmul.f32 %v1318, 0.5
    %v1383 = vmul.f32 %v1319, 0.5
    %v1384 = vmul.f32 %v1320, 0.5
    %v1385 = vmul.f32 %v1321, 0.5
    %v1386 = vmul.f32 %v1322, 0.5
    %v1387 = vmul.f32 %v1323, 0.5
    %v1388 = vmul.f32 %v1324, 0.5
    %v1389 = vmul.f32 %v1325, 0.5
    %v1390 = vmul.f32 %v1326, 0.5
    %v1391 = vmul.f32 %v1327, 0.5
    %v1392 = vmul.f32 %v1328, 0.5
    %v1393 = vmul.f32 %v1329, 0.5
    %v1394 = vmul.f32 %v1330, 0.5
    %v1395 = vmul.f32 %v1331, 0.5
    %v1396 = vld [vmem:[%s6] sm:$0xff]
    %v1397 = vld [vmem:[%s6 + $0x8] sm:$0xff]
    %v1398 = vld [vmem:[%s6 + $0x10] sm:$0xff]
    %v1399 = vld [vmem:[%s6 + $0x18] sm:$0xff]
    %v1400 = vld [vmem:[%s6 + $0x20] sm:$0xff]
    %v1401 = vld [vmem:[%s6 + $0x28] sm:$0xff]
    %v1402 = vld [vmem:[%s6 + $0x30] sm:$0xff]
    %v1403 = vld [vmem:[%s6 + $0x38] sm:$0xff]
    %v1404 = vld [vmem:[%s6 + $0x40] sm:$0xff]
    %v1405 = vld [vmem:[%s6 + $0x48] sm:$0xff]
    %v1406 = vld [vmem:[%s6 + $0x50] sm:$0xff]
    %v1407 = vld [vmem:[%s6 + $0x58] sm:$0xff]
    %v1408 = vld [vmem:[%s6 + $0x60] sm:$0xff]
    %v1409 = vld [vmem:[%s6 + $0x68] sm:$0xff]
    %v1410 = vld [vmem:[%s6 + $0x70] sm:$0xff]
    %v1411 = vld [vmem:[%s6 + $0x78] sm:$0xff]
    %v1412 = vld [vmem:[%s6 + $0x80] sm:$0xff]
    %v1413 = vld [vmem:[%s6 + $0x88] sm:$0xff]
    %v1414 = vld [vmem:[%s6 + $0x90] sm:$0xff]
    %v1415 = vld [vmem:[%s6 + $0x98] sm:$0xff]
    %v1416 = vld [vmem:[%s6 + $0xa0] sm:$0xff]
    %v1417 = vld [vmem:[%s6 + $0xa8] sm:$0xff]
    %v1418 = vld [vmem:[%s6 + $0xb0] sm:$0xff]
    %v1419 = vld [vmem:[%s6 + $0xb8] sm:$0xff]
    %v1420 = vld [vmem:[%s6 + $0xc0] sm:$0xff]
    %v1421 = vld [vmem:[%s6 + $0xc8] sm:$0xff]
    %v1422 = vld [vmem:[%s6 + $0xd0] sm:$0xff]
    %v1423 = vld [vmem:[%s6 + $0xd8] sm:$0xff]
    %v1424 = vld [vmem:[%s6 + $0xe0] sm:$0xff]
    %v1425 = vld [vmem:[%s6 + $0xe8] sm:$0xff]
    %v1426 = vld [vmem:[%s6 + $0xf0] sm:$0xff]
    %v1427 = vld [vmem:[%s6 + $0xf8] sm:$0xff]
    %v1428 = vld [vmem:[%s6 + $0x100] sm:$0xff]
    %v1429 = vld [vmem:[%s6 + $0x108] sm:$0xff]
    %v1430 = vld [vmem:[%s6 + $0x110] sm:$0xff]
    %v1431 = vld [vmem:[%s6 + $0x118] sm:$0xff]
    %v1432 = vld [vmem:[%s6 + $0x120] sm:$0xff]
    %v1433 = vld [vmem:[%s6 + $0x128] sm:$0xff]
    %v1434 = vld [vmem:[%s6 + $0x130] sm:$0xff]
    %v1435 = vld [vmem:[%s6 + $0x138] sm:$0xff]
    %v1436 = vld [vmem:[%s6 + $0x140] sm:$0xff]
    %v1437 = vld [vmem:[%s6 + $0x148] sm:$0xff]
    %v1438 = vld [vmem:[%s6 + $0x150] sm:$0xff]
    %v1439 = vld [vmem:[%s6 + $0x158] sm:$0xff]
    %v1440 = vld [vmem:[%s6 + $0x160] sm:$0xff]
    %v1441 = vld [vmem:[%s6 + $0x168] sm:$0xff]
    %v1442 = vld [vmem:[%s6 + $0x170] sm:$0xff]
    %v1443 = vld [vmem:[%s6 + $0x178] sm:$0xff]
    %v1444 = vld [vmem:[%s6 + $0x180] sm:$0xff]
    %v1445 = vld [vmem:[%s6 + $0x188] sm:$0xff]
    %v1446 = vld [vmem:[%s6 + $0x190] sm:$0xff]
    %v1447 = vld [vmem:[%s6 + $0x198] sm:$0xff]
    %v1448 = vld [vmem:[%s6 + $0x1a0] sm:$0xff]
    %v1449 = vld [vmem:[%s6 + $0x1a8] sm:$0xff]
    %v1450 = vld [vmem:[%s6 + $0x1b0] sm:$0xff]
    %v1451 = vld [vmem:[%s6 + $0x1b8] sm:$0xff]
    %v1452 = vld [vmem:[%s6 + $0x1c0] sm:$0xff]
    %v1453 = vld [vmem:[%s6 + $0x1c8] sm:$0xff]
    %v1454 = vld [vmem:[%s6 + $0x1d0] sm:$0xff]
    %v1455 = vld [vmem:[%s6 + $0x1d8] sm:$0xff]
    %v1456 = vld [vmem:[%s6 + $0x1e0] sm:$0xff]
    %v1457 = vld [vmem:[%s6 + $0x1e8] sm:$0xff]
    %v1458 = vld [vmem:[%s6 + $0x1f0] sm:$0xff]
    %v1459 = vld [vmem:[%s6 + $0x1f8] sm:$0xff]
    %v1460 = vpack.c.bf16 %v1333, %v1332
    %v1461 = vpack.c.bf16 %v1335, %v1334
    %v1462 = vpack.c.bf16 %v1337, %v1336
    %v1463 = vpack.c.bf16 %v1339, %v1338
    %v1464 = vpack.c.bf16 %v1341, %v1340
    %v1465 = vpack.c.bf16 %v1343, %v1342
    %v1466 = vpack.c.bf16 %v1345, %v1344
    %v1467 = vpack.c.bf16 %v1347, %v1346
    %v1468 = vpack.c.bf16 %v1349, %v1348
    %v1469 = vpack.c.bf16 %v1351, %v1350
    %v1470 = vpack.c.bf16 %v1353, %v1352
    %v1471 = vpack.c.bf16 %v1355, %v1354
    %v1472 = vpack.c.bf16 %v1357, %v1356
    %v1473 = vpack.c.bf16 %v1359, %v1358
    %v1474 = vpack.c.bf16 %v1361, %v1360
    %v1475 = vpack.c.bf16 %v1363, %v1362
    %v1476 = vpack.c.bf16 %v1365, %v1364
    %v1477 = vpack.c.bf16 %v1367, %v1366
    %v1478 = vpack.c.bf16 %v1369, %v1368
    %v1479 = vpack.c.bf16 %v1371, %v1370
    %v1480 = vpack.c.bf16 %v1373, %v1372
    %v1481 = vpack.c.bf16 %v1375, %v1374
    %v1482 = vpack.c.bf16 %v1377, %v1376
    %v1483 = vpack.c.bf16 %v1379, %v1378
    %v1484 = vpack.c.bf16 %v1381, %v1380
    %v1485 = vpack.c.bf16 %v1383, %v1382
    %v1486 = vpack.c.bf16 %v1385, %v1384
    %v1487 = vpack.c.bf16 %v1387, %v1386
    %v1488 = vpack.c.bf16 %v1389, %v1388
    %v1489 = vpack.c.bf16 %v1391, %v1390
    %v1490 = vpack.c.bf16 %v1393, %v1392
    %v1491 = vpack.c.bf16 %v1395, %v1394
    %v1492 = vld [vmem:[%s7] sm:$0xff]
    %v1493 = vld [vmem:[%s7 + $0x8] sm:$0xff]
    %v1494 = vld [vmem:[%s7 + $0x10] sm:$0xff]
    %v1495 = vld [vmem:[%s7 + $0x18] sm:$0xff]
    %v1496 = vld [vmem:[%s7 + $0x20] sm:$0xff]
    %v1497 = vld [vmem:[%s7 + $0x28] sm:$0xff]
    %v1498 = vld [vmem:[%s7 + $0x30] sm:$0xff]
    %v1499 = vld [vmem:[%s7 + $0x38] sm:$0xff]
    %v1500 = vld [vmem:[%s7 + $0x40] sm:$0xff]
    %v1501 = vld [vmem:[%s7 + $0x48] sm:$0xff]
    %v1502 = vld [vmem:[%s7 + $0x50] sm:$0xff]
    %v1503 = vld [vmem:[%s7 + $0x58] sm:$0xff]
    %v1504 = vld [vmem:[%s7 + $0x60] sm:$0xff]
    %v1505 = vld [vmem:[%s7 + $0x68] sm:$0xff]
    %v1506 = vld [vmem:[%s7 + $0x70] sm:$0xff]
    %v1507 = vld [vmem:[%s7 + $0x78] sm:$0xff]
    %v1508 = vld [vmem:[%s7 + $0x80] sm:$0xff]
    %v1509 = vld [vmem:[%s7 + $0x88] sm:$0xff]
    %v1510 = vld [vmem:[%s7 + $0x90] sm:$0xff]
    %v1511 = vld [vmem:[%s7 + $0x98] sm:$0xff]
    %v1512 = vld [vmem:[%s7 + $0xa0] sm:$0xff]
    %v1513 = vld [vmem:[%s7 + $0xa8] sm:$0xff]
    %v1514 = vld [vmem:[%s7 + $0xb0] sm:$0xff]
    %v1515 = vld [vmem:[%s7 + $0xb8] sm:$0xff]
    %v1516 = vld [vmem:[%s7 + $0xc0] sm:$0xff]
    %v1517 = vld [vmem:[%s7 + $0xc8] sm:$0xff]
    %v1518 = vld [vmem:[%s7 + $0xd0] sm:$0xff]
    %v1519 = vld [vmem:[%s7 + $0xd8] sm:$0xff]
    %v1520 = vld [vmem:[%s7 + $0xe0] sm:$0xff]
    %v1521 = vld [vmem:[%s7 + $0xe8] sm:$0xff]
    %v1522 = vld [vmem:[%s7 + $0xf0] sm:$0xff]
    %v1523 = vld [vmem:[%s7 + $0xf8] sm:$0xff]
    %1525 = vset.pattern.permute.xlu0 0
    %1526 = vperm.xlu0 %1525, %v1492
    %v1527 = vpop.permute.xlu0 %1526
    %1530 = vset.pattern.permute.xlu0 0
    %1531 = vperm.xlu0 %1530, %v1493
    %v1532 = vpop.permute.xlu0 %1531
    %1535 = vset.pattern.permute.xlu0 0
    %1536 = vperm.xlu0 %1535, %v1494
    %v1537 = vpop.permute.xlu0 %1536
    %1540 = vset.pattern.permute.xlu0 0
    %1541 = vperm.xlu0 %1540, %v1495
    %v1542 = vpop.permute.xlu0 %1541
    %1545 = vset.pattern.permute.xlu0 0
    %1546 = vperm.xlu0 %1545, %v1496
    %v1547 = vpop.permute.xlu0 %1546
    %1550 = vset.pattern.permute.xlu0 0
    %1551 = vperm.xlu0 %1550, %v1497
    %v1552 = vpop.permute.xlu0 %1551
    %1555 = vset.pattern.permute.xlu0 0
    %1556 = vperm.xlu0 %1555, %v1498
    %v1557 = vpop.permute.xlu0 %1556
    %1560 = vset.pattern.permute.xlu0 0
    %1561 = vperm.xlu0 %1560, %v1499
    %v1562 = vpop.permute.xlu0 %1561
    %1565 = vset.pattern.permute.xlu0 0
    %1566 = vperm.xlu0 %1565, %v1500
    %v1567 = vpop.permute.xlu0 %1566
    %1570 = vset.pattern.permute.xlu0 0
    %1571 = vperm.xlu0 %1570, %v1501
    %v1572 = vpop.permute.xlu0 %1571
    %1575 = vset.pattern.permute.xlu0 0
    %1576 = vperm.xlu0 %1575, %v1502
    %v1577 = vpop.permute.xlu0 %1576
    %1580 = vset.pattern.permute.xlu0 0
    %1581 = vperm.xlu0 %1580, %v1503
    %v1582 = vpop.permute.xlu0 %1581
    %1585 = vset.pattern.permute.xlu0 0
    %1586 = vperm.xlu0 %1585, %v1504
    %v1587 = vpop.permute.xlu0 %1586
    %1590 = vset.pattern.permute.xlu0 0
    %1591 = vperm.xlu0 %1590, %v1505
    %v1592 = vpop.permute.xlu0 %1591
    %1595 = vset.pattern.permute.xlu0 0
    %1596 = vperm.xlu0 %1595, %v1506
    %v1597 = vpop.permute.xlu0 %1596
    %1600 = vset.pattern.permute.xlu0 0
    %1601 = vperm.xlu0 %1600, %v1507
    %v1602 = vpop.permute.xlu0 %1601
    %1605 = vset.pattern.permute.xlu0 0
    %1606 = vperm.xlu0 %1605, %v1508
    %v1607 = vpop.permute.xlu0 %1606
    %1610 = vset.pattern.permute.xlu0 0
    %1611 = vperm.xlu0 %1610, %v1509
    %v1612 = vpop.permute.xlu0 %1611
    %1615 = vset.pattern.permute.xlu0 0
    %1616 = vperm.xlu0 %1615, %v1510
    %v1617 = vpop.permute.xlu0 %1616
    %1620 = vset.pattern.permute.xlu0 0
    %1621 = vperm.xlu0 %1620, %v1511
    %v1622 = vpop.permute.xlu0 %1621
    %1625 = vset.pattern.permute.xlu0 0
    %1626 = vperm.xlu0 %1625, %v1512
    %v1627 = vpop.permute.xlu0 %1626
    %1630 = vset.pattern.permute.xlu0 0
    %1631 = vperm.xlu0 %1630, %v1513
    %v1632 = vpop.permute.xlu0 %1631
    %1635 = vset.pattern.permute.xlu0 0
    %1636 = vperm.xlu0 %1635, %v1514
    %v1637 = vpop.permute.xlu0 %1636
    %1640 = vset.pattern.permute.xlu0 0
    %1641 = vperm.xlu0 %1640, %v1515
    %v1642 = vpop.permute.xlu0 %1641
    %1645 = vset.pattern.permute.xlu0 0
    %1646 = vperm.xlu0 %1645, %v1516
    %v1647 = vpop.permute.xlu0 %1646
    %1650 = vset.pattern.permute.xlu0 0
    %1651 = vperm.xlu0 %1650, %v1517
    %v1652 = vpop.permute.xlu0 %1651
    %1655 = vset.pattern.permute.xlu0 0
    %1656 = vperm.xlu0 %1655, %v1518
    %v1657 = vpop.permute.xlu0 %1656
    %1660 = vset.pattern.permute.xlu0 0
    %1661 = vperm.xlu0 %1660, %v1519
    %v1662 = vpop.permute.xlu0 %1661
    %1665 = vset.pattern.permute.xlu0 0
    %1666 = vperm.xlu0 %1665, %v1520
    %v1667 = vpop.permute.xlu0 %1666
    %1670 = vset.pattern.permute.xlu0 0
    %1671 = vperm.xlu0 %1670, %v1521
    %v1672 = vpop.permute.xlu0 %1671
    %1675 = vset.pattern.permute.xlu0 0
    %1676 = vperm.xlu0 %1675, %v1522
    %v1677 = vpop.permute.xlu0 %1676
    %1680 = vset.pattern.permute.xlu0 0
    %1681 = vperm.xlu0 %1680, %v1523
    %v1682 = vpop.permute.xlu0 %1681
    %v1748 = vunpack.c.l.b16 %v1396
    %v1749 = vunpack.c.h.b16 %v1396
    %v1750 = vunpack.c.l.b16 %v1397
    %v1751 = vunpack.c.h.b16 %v1397
    %v1752 = vunpack.c.l.b16 %v1398
    %v1753 = vunpack.c.h.b16 %v1398
    %v1754 = vunpack.c.l.b16 %v1399
    %v1755 = vunpack.c.h.b16 %v1399
    %v1756 = vunpack.c.l.b16 %v1400
    %v1757 = vunpack.c.h.b16 %v1400
    %v1758 = vunpack.c.l.b16 %v1401
    %v1759 = vunpack.c.h.b16 %v1401
    %v1760 = vunpack.c.l.b16 %v1402
    %v1761 = vunpack.c.h.b16 %v1402
    %v1762 = vunpack.c.l.b16 %v1403
    %v1763 = vunpack.c.h.b16 %v1403
    %v1764 = vunpack.c.l.b16 %v1404
    %v1765 = vunpack.c.h.b16 %v1404
    %v1766 = vunpack.c.l.b16 %v1405
    %v1767 = vunpack.c.h.b16 %v1405
    %v1768 = vunpack.c.l.b16 %v1406
    %v1769 = vunpack.c.h.b16 %v1406
    %v1770 = vunpack.c.l.b16 %v1407
    %v1771 = vunpack.c.h.b16 %v1407
    %v1772 = vunpack.c.l.b16 %v1408
    %v1773 = vunpack.c.h.b16 %v1408
    %v1774 = vunpack.c.l.b16 %v1409
    %v1775 = vunpack.c.h.b16 %v1409
    %v1776 = vunpack.c.l.b16 %v1410
    %v1777 = vunpack.c.h.b16 %v1410
    %v1778 = vunpack.c.l.b16 %v1411
    %v1779 = vunpack.c.h.b16 %v1411
    %v1780 = vunpack.c.l.b16 %v1412
    %v1781 = vunpack.c.h.b16 %v1412
    %v1782 = vunpack.c.l.b16 %v1413
    %v1783 = vunpack.c.h.b16 %v1413
    %v1784 = vunpack.c.l.b16 %v1414
    %v1785 = vunpack.c.h.b16 %v1414
    %v1786 = vunpack.c.l.b16 %v1415
    %v1787 = vunpack.c.h.b16 %v1415
    %v1788 = vunpack.c.l.b16 %v1416
    %v1789 = vunpack.c.h.b16 %v1416
    %v1790 = vunpack.c.l.b16 %v1417
    %v1791 = vunpack.c.h.b16 %v1417
    %v1792 = vunpack.c.l.b16 %v1418
    %v1793 = vunpack.c.h.b16 %v1418
    %v1794 = vunpack.c.l.b16 %v1419
    %v1795 = vunpack.c.h.b16 %v1419
    %v1796 = vunpack.c.l.b16 %v1420
    %v1797 = vunpack.c.h.b16 %v1420
    %v1798 = vunpack.c.l.b16 %v1421
    %v1799 = vunpack.c.h.b16 %v1421
    %v1800 = vunpack.c.l.b16 %v1422
    %v1801 = vunpack.c.h.b16 %v1422
    %v1802 = vunpack.c.l.b16 %v1423
    %v1803 = vunpack.c.h.b16 %v1423
    %v1804 = vunpack.c.l.b16 %v1424
    %v1805 = vunpack.c.h.b16 %v1424
    %v1806 = vunpack.c.l.b16 %v1425
    %v1807 = vunpack.c.h.b16 %v1425
    %v1808 = vunpack.c.l.b16 %v1426
    %v1809 = vunpack.c.h.b16 %v1426
    %v1810 = vunpack.c.l.b16 %v1427
    %v1811 = vunpack.c.h.b16 %v1427
    %v1812 = vunpack.c.l.b16 %v1428
    %v1813 = vunpack.c.h.b16 %v1428
    %v1814 = vunpack.c.l.b16 %v1429
    %v1815 = vunpack.c.h.b16 %v1429
    %v1816 = vunpack.c.l.b16 %v1430
    %v1817 = vunpack.c.h.b16 %v1430
    %v1818 = vunpack.c.l.b16 %v1431
    %v1819 = vunpack.c.h.b16 %v1431
    %v1820 = vunpack.c.l.b16 %v1432
    %v1821 = vunpack.c.h.b16 %v1432
    %v1822 = vunpack.c.l.b16 %v1433
    %v1823 = vunpack.c.h.b16 %v1433
    %v1824 = vunpack.c.l.b16 %v1434
    %v1825 = vunpack.c.h.b16 %v1434
    %v1826 = vunpack.c.l.b16 %v1435
    %v1827 = vunpack.c.h.b16 %v1435
    %v1828 = vunpack.c.l.b16 %v1436
    %v1829 = vunpack.c.h.b16 %v1436
    %v1830 = vunpack.c.l.b16 %v1437
    %v1831 = vunpack.c.h.b16 %v1437
    %v1832 = vunpack.c.l.b16 %v1438
    %v1833 = vunpack.c.h.b16 %v1438
    %v1834 = vunpack.c.l.b16 %v1439
    %v1835 = vunpack.c.h.b16 %v1439
    %v1836 = vunpack.c.l.b16 %v1440
    %v1837 = vunpack.c.h.b16 %v1440
    %v1838 = vunpack.c.l.b16 %v1441
    %v1839 = vunpack.c.h.b16 %v1441
    %v1840 = vunpack.c.l.b16 %v1442
    %v1841 = vunpack.c.h.b16 %v1442
    %v1842 = vunpack.c.l.b16 %v1443
    %v1843 = vunpack.c.h.b16 %v1443
    %v1844 = vunpack.c.l.b16 %v1444
    %v1845 = vunpack.c.h.b16 %v1444
    %v1846 = vunpack.c.l.b16 %v1445
    %v1847 = vunpack.c.h.b16 %v1445
    %v1848 = vunpack.c.l.b16 %v1446
    %v1849 = vunpack.c.h.b16 %v1446
    %v1850 = vunpack.c.l.b16 %v1447
    %v1851 = vunpack.c.h.b16 %v1447
    %v1852 = vunpack.c.l.b16 %v1448
    %v1853 = vunpack.c.h.b16 %v1448
    %v1854 = vunpack.c.l.b16 %v1449
    %v1855 = vunpack.c.h.b16 %v1449
    %v1856 = vunpack.c.l.b16 %v1450
    %v1857 = vunpack.c.h.b16 %v1450
    %v1858 = vunpack.c.l.b16 %v1451
    %v1859 = vunpack.c.h.b16 %v1451
    %v1860 = vunpack.c.l.b16 %v1452
    %v1861 = vunpack.c.h.b16 %v1452
    %v1862 = vunpack.c.l.b16 %v1453
    %v1863 = vunpack.c.h.b16 %v1453
    %v1864 = vunpack.c.l.b16 %v1454
    %v1865 = vunpack.c.h.b16 %v1454
    %v1866 = vunpack.c.l.b16 %v1455
    %v1867 = vunpack.c.h.b16 %v1455
    %v1868 = vunpack.c.l.b16 %v1456
    %v1869 = vunpack.c.h.b16 %v1456
    %v1870 = vunpack.c.l.b16 %v1457
    %v1871 = vunpack.c.h.b16 %v1457
    %v1872 = vunpack.c.l.b16 %v1458
    %v1873 = vunpack.c.h.b16 %v1458
    %v1874 = vunpack.c.l.b16 %v1459
    %v1875 = vunpack.c.h.b16 %v1459
    %v1876 = vpack.c.b16 %v1752, %v1748
    %v1877 = vpack.c.b16 %v1753, %v1749
    %v1878 = vpack.c.b16 %v1754, %v1750
    %v1879 = vpack.c.b16 %v1755, %v1751
    %v1880 = vpack.c.b16 %v1760, %v1756
    %v1881 = vpack.c.b16 %v1761, %v1757
    %v1882 = vpack.c.b16 %v1762, %v1758
    %v1883 = vpack.c.b16 %v1763, %v1759
    %v1884 = vpack.c.b16 %v1768, %v1764
    %v1885 = vpack.c.b16 %v1769, %v1765
    %v1886 = vpack.c.b16 %v1770, %v1766
    %v1887 = vpack.c.b16 %v1771, %v1767
    %v1888 = vpack.c.b16 %v1776, %v1772
    %v1889 = vpack.c.b16 %v1777, %v1773
    %v1890 = vpack.c.b16 %v1778, %v1774
    %v1891 = vpack.c.b16 %v1779, %v1775
    %v1892 = vpack.c.b16 %v1784, %v1780
    %v1893 = vpack.c.b16 %v1785, %v1781
    %v1894 = vpack.c.b16 %v1786, %v1782
    %v1895 = vpack.c.b16 %v1787, %v1783
    %v1896 = vpack.c.b16 %v1792, %v1788
    %v1897 = vpack.c.b16 %v1793, %v1789
    %v1898 = vpack.c.b16 %v1794, %v1790
    %v1899 = vpack.c.b16 %v1795, %v1791
    %v1900 = vpack.c.b16 %v1800, %v1796
    %v1901 = vpack.c.b16 %v1801, %v1797
    %v1902 = vpack.c.b16 %v1802, %v1798
    %v1903 = vpack.c.b16 %v1803, %v1799
    %v1904 = vpack.c.b16 %v1808, %v1804
    %v1905 = vpack.c.b16 %v1809, %v1805
    %v1906 = vpack.c.b16 %v1810, %v1806
    %v1907 = vpack.c.b16 %v1811, %v1807
    %v1908 = vpack.c.b16 %v1816, %v1812
    %v1909 = vpack.c.b16 %v1817, %v1813
    %v1910 = vpack.c.b16 %v1818, %v1814
    %v1911 = vpack.c.b16 %v1819, %v1815
    %v1912 = vpack.c.b16 %v1824, %v1820
    %v1913 = vpack.c.b16 %v1825, %v1821
    %v1914 = vpack.c.b16 %v1826, %v1822
    %v1915 = vpack.c.b16 %v1827, %v1823
    %v1916 = vpack.c.b16 %v1832, %v1828
    %v1917 = vpack.c.b16 %v1833, %v1829
    %v1918 = vpack.c.b16 %v1834, %v1830
    %v1919 = vpack.c.b16 %v1835, %v1831
    %v1920 = vpack.c.b16 %v1840, %v1836
    %v1921 = vpack.c.b16 %v1841, %v1837
    %v1922 = vpack.c.b16 %v1842, %v1838
    %v1923 = vpack.c.b16 %v1843, %v1839
    %v1924 = vpack.c.b16 %v1848, %v1844
    %v1925 = vpack.c.b16 %v1849, %v1845
    %v1926 = vpack.c.b16 %v1850, %v1846
    %v1927 = vpack.c.b16 %v1851, %v1847
    %v1928 = vpack.c.b16 %v1856, %v1852
    %v1929 = vpack.c.b16 %v1857, %v1853
    %v1930 = vpack.c.b16 %v1858, %v1854
    %v1931 = vpack.c.b16 %v1859, %v1855
    %v1932 = vpack.c.b16 %v1864, %v1860
    %v1933 = vpack.c.b16 %v1865, %v1861
    %v1934 = vpack.c.b16 %v1866, %v1862
    %v1935 = vpack.c.b16 %v1867, %v1863
    %v1936 = vpack.c.b16 %v1872, %v1868
    %v1937 = vpack.c.b16 %v1873, %v1869
    %v1938 = vpack.c.b16 %v1874, %v1870
    %v1939 = vpack.c.b16 %v1875, %v1871
    %2004 = vmatpush.bf16.msra.mxu0 %v1467
    %2005 = vmatpush.bf16.msra.mxu0 %v1466
    %2006 = vmatpush.bf16.msra.mxu0 %v1465
    %2007 = vmatpush.bf16.msra.mxu0 %v1464
    %2008 = vmatpush.bf16.msra.mxu0 %v1463
    %2009 = vmatpush.bf16.msra.mxu0 %v1462
    %2010 = vmatpush.bf16.msra.mxu0 %v1461
    %2011 = vmatpush.bf16.msra.mxu0 %v1460
    %2012 = vmatmul.bf16.gmra.mxu0 %v1876
    %v2013 = vpop.f32.mrf.mxu0
    %v2014 = vadd.f32 %v1527, %v2013
    %v2015 = vpop.f32.mrf.mxu0
    %v2016 = vadd.f32 %v1532, %v2015
    %2017 = vmatmul.bf16.gmra.mxu0 %v1880
    %v2018 = vpop.f32.mrf.mxu0
    %v2019 = vadd.f32 %v1537, %v2018
    %v2020 = vpop.f32.mrf.mxu0
    %v2021 = vadd.f32 %v1542, %v2020
    %2022 = vmatmul.bf16.gmra.mxu0 %v1884
    %v2023 = vpop.f32.mrf.mxu0
    %v2024 = vadd.f32 %v1547, %v2023
    %v2025 = vpop.f32.mrf.mxu0
    %v2026 = vadd.f32 %v1552, %v2025
    %2027 = vmatmul.bf16.gmra.mxu0 %v1888
    %v2028 = vpop.f32.mrf.mxu0
    %v2029 = vadd.f32 %v1557, %v2028
    %v2030 = vpop.f32.mrf.mxu0
    %v2031 = vadd.f32 %v1562, %v2030
    %2032 = vmatmul.bf16.gmra.mxu0 %v1892
    %v2033 = vpop.f32.mrf.mxu0
    %v2034 = vadd.f32 %v1567, %v2033
    %v2035 = vpop.f32.mrf.mxu0
    %v2036 = vadd.f32 %v1572, %v2035
    %2037 = vmatmul.bf16.gmra.mxu0 %v1896
    %v2038 = vpop.f32.mrf.mxu0
    %v2039 = vadd.f32 %v1577, %v2038
    %v2040 = vpop.f32.mrf.mxu0
    %v2041 = vadd.f32 %v1582, %v2040
    %2042 = vmatmul.bf16.gmra.mxu0 %v1900
    %v2043 = vpop.f32.mrf.mxu0
    %v2044 = vadd.f32 %v1587, %v2043
    %v2045 = vpop.f32.mrf.mxu0
    %v2046 = vadd.f32 %v1592, %v2045
    %2047 = vmatmul.bf16.gmra.mxu0 %v1904
    %v2048 = vpop.f32.mrf.mxu0
    %v2049 = vadd.f32 %v1597, %v2048
    %v2050 = vpop.f32.mrf.mxu0
    %v2051 = vadd.f32 %v1602, %v2050
    %2052 = vmatmul.bf16.gmra.mxu0 %v1908
    %v2053 = vpop.f32.mrf.mxu0
    %v2054 = vadd.f32 %v1607, %v2053
    %v2055 = vpop.f32.mrf.mxu0
    %v2056 = vadd.f32 %v1612, %v2055
    %2057 = vmatmul.bf16.gmra.mxu0 %v1912
    %v2058 = vpop.f32.mrf.mxu0
    %v2059 = vadd.f32 %v1617, %v2058
    %v2060 = vpop.f32.mrf.mxu0
    %v2061 = vadd.f32 %v1622, %v2060
    %2062 = vmatmul.bf16.gmra.mxu0 %v1916
    %v2063 = vpop.f32.mrf.mxu0
    %v2064 = vadd.f32 %v1627, %v2063
    %v2065 = vpop.f32.mrf.mxu0
    %v2066 = vadd.f32 %v1632, %v2065
    %2067 = vmatmul.bf16.gmra.mxu0 %v1920
    %v2068 = vpop.f32.mrf.mxu0
    %v2069 = vadd.f32 %v1637, %v2068
    %v2070 = vpop.f32.mrf.mxu0
    %v2071 = vadd.f32 %v1642, %v2070
    %2072 = vmatmul.bf16.gmra.mxu0 %v1924
    %v2073 = vpop.f32.mrf.mxu0
    %v2074 = vadd.f32 %v1647, %v2073
    %v2075 = vpop.f32.mrf.mxu0
    %v2076 = vadd.f32 %v1652, %v2075
    %2077 = vmatmul.bf16.gmra.mxu0 %v1928
    %v2078 = vpop.f32.mrf.mxu0
    %v2079 = vadd.f32 %v1657, %v2078
    %v2080 = vpop.f32.mrf.mxu0
    %v2081 = vadd.f32 %v1662, %v2080
    %2082 = vmatmul.bf16.gmra.mxu0 %v1932
    %v2083 = vpop.f32.mrf.mxu0
    %v2084 = vadd.f32 %v1667, %v2083
    %v2085 = vpop.f32.mrf.mxu0
    %v2086 = vadd.f32 %v1672, %v2085
    %2087 = vmatmul.bf16.gmra.mxu0 %v1936
    %v2088 = vpop.f32.mrf.mxu0
    %v2089 = vadd.f32 %v1677, %v2088
    %v2090 = vpop.f32.mrf.mxu0
    %v2091 = vadd.f32 %v1682, %v2090
    %2092 = vdwg.mxu0
    %2093 = vmatpush.bf16.msra.mxu0 %v1475
    %2094 = vmatpush.bf16.msra.mxu0 %v1474
    %2095 = vmatpush.bf16.msra.mxu0 %v1473
    %2096 = vmatpush.bf16.msra.mxu0 %v1472
    %2097 = vmatpush.bf16.msra.mxu0 %v1471
    %2098 = vmatpush.bf16.msra.mxu0 %v1470
    %2099 = vmatpush.bf16.msra.mxu0 %v1469
    %2100 = vmatpush.bf16.msra.mxu0 %v1468
    %2101 = vmatmul.bf16.gmra.mxu0 %v1877
    %v2102 = vpop.f32.mrf.mxu0
    %v2103 = vadd.f32 %v2014, %v2102
    %v2104 = vpop.f32.mrf.mxu0
    %v2105 = vadd.f32 %v2016, %v2104
    %2106 = vmatmul.bf16.gmra.mxu0 %v1881
    %v2107 = vpop.f32.mrf.mxu0
    %v2108 = vadd.f32 %v2019, %v2107
    %v2109 = vpop.f32.mrf.mxu0
    %v2110 = vadd.f32 %v2021, %v2109
    %2111 = vmatmul.bf16.gmra.mxu0 %v1885
    %v2112 = vpop.f32.mrf.mxu0
    %v2113 = vadd.f32 %v2024, %v2112
    %v2114 = vpop.f32.mrf.mxu0
    %v2115 = vadd.f32 %v2026, %v2114
    %2116 = vmatmul.bf16.gmra.mxu0 %v1889
    %v2117 = vpop.f32.mrf.mxu0
    %v2118 = vadd.f32 %v2029, %v2117
    %v2119 = vpop.f32.mrf.mxu0
    %v2120 = vadd.f32 %v2031, %v2119
    %2121 = vmatmul.bf16.gmra.mxu0 %v1893
    %v2122 = vpop.f32.mrf.mxu0
    %v2123 = vadd.f32 %v2034, %v2122
    %v2124 = vpop.f32.mrf.mxu0
    %v2125 = vadd.f32 %v2036, %v2124
    %2126 = vmatmul.bf16.gmra.mxu0 %v1897
    %v2127 = vpop.f32.mrf.mxu0
    %v2128 = vadd.f32 %v2039, %v2127
    %v2129 = vpop.f32.mrf.mxu0
    %v2130 = vadd.f32 %v2041, %v2129
    %2131 = vmatmul.bf16.gmra.mxu0 %v1901
    %v2132 = vpop.f32.mrf.mxu0
    %v2133 = vadd.f32 %v2044, %v2132
    %v2134 = vpop.f32.mrf.mxu0
    %v2135 = vadd.f32 %v2046, %v2134
    %2136 = vmatmul.bf16.gmra.mxu0 %v1905
    %v2137 = vpop.f32.mrf.mxu0
    %v2138 = vadd.f32 %v2049, %v2137
    %v2139 = vpop.f32.mrf.mxu0
    %v2140 = vadd.f32 %v2051, %v2139
    %2141 = vmatmul.bf16.gmra.mxu0 %v1909
    %v2142 = vpop.f32.mrf.mxu0
    %v2143 = vadd.f32 %v2054, %v2142
    %v2144 = vpop.f32.mrf.mxu0
    %v2145 = vadd.f32 %v2056, %v2144
    %2146 = vmatmul.bf16.gmra.mxu0 %v1913
    %v2147 = vpop.f32.mrf.mxu0
    %v2148 = vadd.f32 %v2059, %v2147
    %v2149 = vpop.f32.mrf.mxu0
    %v2150 = vadd.f32 %v2061, %v2149
    %2151 = vmatmul.bf16.gmra.mxu0 %v1917
    %v2152 = vpop.f32.mrf.mxu0
    %v2153 = vadd.f32 %v2064, %v2152
    %v2154 = vpop.f32.mrf.mxu0
    %v2155 = vadd.f32 %v2066, %v2154
    %2156 = vmatmul.bf16.gmra.mxu0 %v1921
    %v2157 = vpop.f32.mrf.mxu0
    %v2158 = vadd.f32 %v2069, %v2157
    %v2159 = vpop.f32.mrf.mxu0
    %v2160 = vadd.f32 %v2071, %v2159
    %2161 = vmatmul.bf16.gmra.mxu0 %v1925
    %v2162 = vpop.f32.mrf.mxu0
    %v2163 = vadd.f32 %v2074, %v2162
    %v2164 = vpop.f32.mrf.mxu0
    %v2165 = vadd.f32 %v2076, %v2164
    %2166 = vmatmul.bf16.gmra.mxu0 %v1929
    %v2167 = vpop.f32.mrf.mxu0
    %v2168 = vadd.f32 %v2079, %v2167
    %v2169 = vpop.f32.mrf.mxu0
    %v2170 = vadd.f32 %v2081, %v2169
    %2171 = vmatmul.bf16.gmra.mxu0 %v1933
    %v2172 = vpop.f32.mrf.mxu0
    %v2173 = vadd.f32 %v2084, %v2172
    %v2174 = vpop.f32.mrf.mxu0
    %v2175 = vadd.f32 %v2086, %v2174
    %2176 = vmatmul.bf16.gmra.mxu0 %v1937
    %v2177 = vpop.f32.mrf.mxu0
    %v2178 = vadd.f32 %v2089, %v2177
    %v2179 = vpop.f32.mrf.mxu0
    %v2180 = vadd.f32 %v2091, %v2179
    %2181 = vdwg.mxu0
    %2182 = vmatpush.bf16.msra.mxu0 %v1483
    %2183 = vmatpush.bf16.msra.mxu0 %v1482
    %2184 = vmatpush.bf16.msra.mxu0 %v1481
    %2185 = vmatpush.bf16.msra.mxu0 %v1480
    %2186 = vmatpush.bf16.msra.mxu0 %v1479
    %2187 = vmatpush.bf16.msra.mxu0 %v1478
    %2188 = vmatpush.bf16.msra.mxu0 %v1477
    %2189 = vmatpush.bf16.msra.mxu0 %v1476
    %2190 = vmatmul.bf16.gmra.mxu0 %v1878
    %v2191 = vpop.f32.mrf.mxu0
    %v2192 = vadd.f32 %v2103, %v2191
    %v2193 = vpop.f32.mrf.mxu0
    %v2194 = vadd.f32 %v2105, %v2193
    %2195 = vmatmul.bf16.gmra.mxu0 %v1882
    %v2196 = vpop.f32.mrf.mxu0
    %v2197 = vadd.f32 %v2108, %v2196
    %v2198 = vpop.f32.mrf.mxu0
    %v2199 = vadd.f32 %v2110, %v2198
    %2200 = vmatmul.bf16.gmra.mxu0 %v1886
    %v2201 = vpop.f32.mrf.mxu0
    %v2202 = vadd.f32 %v2113, %v2201
    %v2203 = vpop.f32.mrf.mxu0
    %v2204 = vadd.f32 %v2115, %v2203
    %2205 = vmatmul.bf16.gmra.mxu0 %v1890
    %v2206 = vpop.f32.mrf.mxu0
    %v2207 = vadd.f32 %v2118, %v2206
    %v2208 = vpop.f32.mrf.mxu0
    %v2209 = vadd.f32 %v2120, %v2208
    %2210 = vmatmul.bf16.gmra.mxu0 %v1894
    %v2211 = vpop.f32.mrf.mxu0
    %v2212 = vadd.f32 %v2123, %v2211
    %v2213 = vpop.f32.mrf.mxu0
    %v2214 = vadd.f32 %v2125, %v2213
    %2215 = vmatmul.bf16.gmra.mxu0 %v1898
    %v2216 = vpop.f32.mrf.mxu0
    %v2217 = vadd.f32 %v2128, %v2216
    %v2218 = vpop.f32.mrf.mxu0
    %v2219 = vadd.f32 %v2130, %v2218
    %2220 = vmatmul.bf16.gmra.mxu0 %v1902
    %v2221 = vpop.f32.mrf.mxu0
    %v2222 = vadd.f32 %v2133, %v2221
    %v2223 = vpop.f32.mrf.mxu0
    %v2224 = vadd.f32 %v2135, %v2223
    %2225 = vmatmul.bf16.gmra.mxu0 %v1906
    %v2226 = vpop.f32.mrf.mxu0
    %v2227 = vadd.f32 %v2138, %v2226
    %v2228 = vpop.f32.mrf.mxu0
    %v2229 = vadd.f32 %v2140, %v2228
    %2230 = vmatmul.bf16.gmra.mxu0 %v1910
    %v2231 = vpop.f32.mrf.mxu0
    %v2232 = vadd.f32 %v2143, %v2231
    %v2233 = vpop.f32.mrf.mxu0
    %v2234 = vadd.f32 %v2145, %v2233
    %2235 = vmatmul.bf16.gmra.mxu0 %v1914
    %v2236 = vpop.f32.mrf.mxu0
    %v2237 = vadd.f32 %v2148, %v2236
    %v2238 = vpop.f32.mrf.mxu0
    %v2239 = vadd.f32 %v2150, %v2238
    %2240 = vmatmul.bf16.gmra.mxu0 %v1918
    %v2241 = vpop.f32.mrf.mxu0
    %v2242 = vadd.f32 %v2153, %v2241
    %v2243 = vpop.f32.mrf.mxu0
    %v2244 = vadd.f32 %v2155, %v2243
    %2245 = vmatmul.bf16.gmra.mxu0 %v1922
    %v2246 = vpop.f32.mrf.mxu0
    %v2247 = vadd.f32 %v2158, %v2246
    %v2248 = vpop.f32.mrf.mxu0
    %v2249 = vadd.f32 %v2160, %v2248
    %2250 = vmatmul.bf16.gmra.mxu0 %v1926
    %v2251 = vpop.f32.mrf.mxu0
    %v2252 = vadd.f32 %v2163, %v2251
    %v2253 = vpop.f32.mrf.mxu0
    %v2254 = vadd.f32 %v2165, %v2253
    %2255 = vmatmul.bf16.gmra.mxu0 %v1930
    %v2256 = vpop.f32.mrf.mxu0
    %v2257 = vadd.f32 %v2168, %v2256
    %v2258 = vpop.f32.mrf.mxu0
    %v2259 = vadd.f32 %v2170, %v2258
    %2260 = vmatmul.bf16.gmra.mxu0 %v1934
    %v2261 = vpop.f32.mrf.mxu0
    %v2262 = vadd.f32 %v2173, %v2261
    %v2263 = vpop.f32.mrf.mxu0
    %v2264 = vadd.f32 %v2175, %v2263
    %2265 = vmatmul.bf16.gmra.mxu0 %v1938
    %v2266 = vpop.f32.mrf.mxu0
    %v2267 = vadd.f32 %v2178, %v2266
    %v2268 = vpop.f32.mrf.mxu0
    %v2269 = vadd.f32 %v2180, %v2268
    %2270 = vdwg.mxu0
    %2271 = vmatpush.bf16.msra.mxu0 %v1491
    %2272 = vmatpush.bf16.msra.mxu0 %v1490
    %2273 = vmatpush.bf16.msra.mxu0 %v1489
    %2274 = vmatpush.bf16.msra.mxu0 %v1488
    %2275 = vmatpush.bf16.msra.mxu0 %v1487
    %2276 = vmatpush.bf16.msra.mxu0 %v1486
    %2277 = vmatpush.bf16.msra.mxu0 %v1485
    %2278 = vmatpush.bf16.msra.mxu0 %v1484
    %2279 = vmatmul.bf16.gmra.mxu0 %v1879
    %v2280 = vpop.f32.mrf.mxu0
    %v2281 = vadd.f32 %v2192, %v2280
    %v2282 = vpop.f32.mrf.mxu0
    %v2283 = vadd.f32 %v2194, %v2282
    %2284 = vmatmul.bf16.gmra.mxu0 %v1883
    %v2285 = vpop.f32.mrf.mxu0
    %v2286 = vadd.f32 %v2197, %v2285
    %v2287 = vpop.f32.mrf.mxu0
    %v2288 = vadd.f32 %v2199, %v2287
    %2289 = vmatmul.bf16.gmra.mxu0 %v1887
    %v2290 = vpop.f32.mrf.mxu0
    %v2291 = vadd.f32 %v2202, %v2290
    %v2292 = vpop.f32.mrf.mxu0
    %v2293 = vadd.f32 %v2204, %v2292
    %2294 = vmatmul.bf16.gmra.mxu0 %v1891
    %v2295 = vpop.f32.mrf.mxu0
    %v2296 = vadd.f32 %v2207, %v2295
    %v2297 = vpop.f32.mrf.mxu0
    %v2298 = vadd.f32 %v2209, %v2297
    %2299 = vmatmul.bf16.gmra.mxu0 %v1895
    %v2300 = vpop.f32.mrf.mxu0
    %v2301 = vadd.f32 %v2212, %v2300
    %v2302 = vpop.f32.mrf.mxu0
    %v2303 = vadd.f32 %v2214, %v2302
    %2304 = vmatmul.bf16.gmra.mxu0 %v1899
    %v2305 = vpop.f32.mrf.mxu0
    %v2306 = vadd.f32 %v2217, %v2305
    %v2307 = vpop.f32.mrf.mxu0
    %v2308 = vadd.f32 %v2219, %v2307
    %2309 = vmatmul.bf16.gmra.mxu0 %v1903
    %v2310 = vpop.f32.mrf.mxu0
    %v2311 = vadd.f32 %v2222, %v2310
    %v2312 = vpop.f32.mrf.mxu0
    %v2313 = vadd.f32 %v2224, %v2312
    %2314 = vmatmul.bf16.gmra.mxu0 %v1907
    %v2315 = vpop.f32.mrf.mxu0
    %v2316 = vadd.f32 %v2227, %v2315
    %v2317 = vpop.f32.mrf.mxu0
    %v2318 = vadd.f32 %v2229, %v2317
    %2319 = vmatmul.bf16.gmra.mxu0 %v1911
    %v2320 = vpop.f32.mrf.mxu0
    %v2321 = vadd.f32 %v2232, %v2320
    %v2322 = vpop.f32.mrf.mxu0
    %v2323 = vadd.f32 %v2234, %v2322
    %2324 = vmatmul.bf16.gmra.mxu0 %v1915
    %v2325 = vpop.f32.mrf.mxu0
    %v2326 = vadd.f32 %v2237, %v2325
    %v2327 = vpop.f32.mrf.mxu0
    %v2328 = vadd.f32 %v2239, %v2327
    %2329 = vmatmul.bf16.gmra.mxu0 %v1919
    %v2330 = vpop.f32.mrf.mxu0
    %v2331 = vadd.f32 %v2242, %v2330
    %v2332 = vpop.f32.mrf.mxu0
    %v2333 = vadd.f32 %v2244, %v2332
    %2334 = vmatmul.bf16.gmra.mxu0 %v1923
    %v2335 = vpop.f32.mrf.mxu0
    %v2336 = vadd.f32 %v2247, %v2335
    %v2337 = vpop.f32.mrf.mxu0
    %v2338 = vadd.f32 %v2249, %v2337
    %2339 = vmatmul.bf16.gmra.mxu0 %v1927
    %v2340 = vpop.f32.mrf.mxu0
    %v2341 = vadd.f32 %v2252, %v2340
    %v2342 = vpop.f32.mrf.mxu0
    %v2343 = vadd.f32 %v2254, %v2342
    %2344 = vmatmul.bf16.gmra.mxu0 %v1931
    %v2345 = vpop.f32.mrf.mxu0
    %v2346 = vadd.f32 %v2257, %v2345
    %v2347 = vpop.f32.mrf.mxu0
    %v2348 = vadd.f32 %v2259, %v2347
    %2349 = vmatmul.bf16.gmra.mxu0 %v1935
    %v2350 = vpop.f32.mrf.mxu0
    %v2351 = vadd.f32 %v2262, %v2350
    %v2352 = vpop.f32.mrf.mxu0
    %v2353 = vadd.f32 %v2264, %v2352
    %2354 = vmatmul.bf16.gmra.mxu0 %v1939
    %v2355 = vpop.f32.mrf.mxu0
    %v2356 = vadd.f32 %v2267, %v2355
    %v2357 = vpop.f32.mrf.mxu0
    %v2358 = vadd.f32 %v2269, %v2357
    %2359 = vdwg.mxu0
    %v2360 = vmul.f32 %v2281, 0.5
    %v2361 = vmul.f32 %v2283, 0.5
    %v2362 = vmul.f32 %v2286, 0.5
    %v2363 = vmul.f32 %v2288, 0.5
    %v2364 = vmul.f32 %v2291, 0.5
    %v2365 = vmul.f32 %v2293, 0.5
    %v2366 = vmul.f32 %v2296, 0.5
    %v2367 = vmul.f32 %v2298, 0.5
    %v2368 = vmul.f32 %v2301, 0.5
    %v2369 = vmul.f32 %v2303, 0.5
    %v2370 = vmul.f32 %v2306, 0.5
    %v2371 = vmul.f32 %v2308, 0.5
    %v2372 = vmul.f32 %v2311, 0.5
    %v2373 = vmul.f32 %v2313, 0.5
    %v2374 = vmul.f32 %v2316, 0.5
    %v2375 = vmul.f32 %v2318, 0.5
    %v2376 = vmul.f32 %v2321, 0.5
    %v2377 = vmul.f32 %v2323, 0.5
    %v2378 = vmul.f32 %v2326, 0.5
    %v2379 = vmul.f32 %v2328, 0.5
    %v2380 = vmul.f32 %v2331, 0.5
    %v2381 = vmul.f32 %v2333, 0.5
    %v2382 = vmul.f32 %v2336, 0.5
    %v2383 = vmul.f32 %v2338, 0.5
    %v2384 = vmul.f32 %v2341, 0.5
    %v2385 = vmul.f32 %v2343, 0.5
    %v2386 = vmul.f32 %v2346, 0.5
    %v2387 = vmul.f32 %v2348, 0.5
    %v2388 = vmul.f32 %v2351, 0.5
    %v2389 = vmul.f32 %v2353, 0.5
    %v2390 = vmul.f32 %v2356, 0.5
    %v2391 = vmul.f32 %v2358, 0.5
    %v2392 = vtanh.pop %v2360
    %v2393 = vtanh.pop %v2361
    %v2394 = vtanh.pop %v2362
    %v2395 = vtanh.pop %v2363
    %v2396 = vtanh.pop %v2364
    %v2397 = vtanh.pop %v2365
    %v2398 = vtanh.pop %v2366
    %v2399 = vtanh.pop %v2367
    %v2400 = vtanh.pop %v2368
    %v2401 = vtanh.pop %v2369
    %v2402 = vtanh.pop %v2370
    %v2403 = vtanh.pop %v2371
    %v2404 = vtanh.pop %v2372
    %v2405 = vtanh.pop %v2373
    %v2406 = vtanh.pop %v2374
    %v2407 = vtanh.pop %v2375
    %v2408 = vtanh.pop %v2376
    %v2409 = vtanh.pop %v2377
    %v2410 = vtanh.pop %v2378
    %v2411 = vtanh.pop %v2379
    %v2412 = vtanh.pop %v2380
    %v2413 = vtanh.pop %v2381
    %v2414 = vtanh.pop %v2382
    %v2415 = vtanh.pop %v2383
    %v2416 = vtanh.pop %v2384
    %v2417 = vtanh.pop %v2385
    %v2418 = vtanh.pop %v2386
    %v2419 = vtanh.pop %v2387
    %v2420 = vtanh.pop %v2388
    %v2421 = vtanh.pop %v2389
    %v2422 = vtanh.pop %v2390
    %v2423 = vtanh.pop %v2391
    %v2424 = vadd.f32 %v2392, 1.0
    %v2425 = vadd.f32 %v2393, 1.0
    %v2426 = vadd.f32 %v2394, 1.0
    %v2427 = vadd.f32 %v2395, 1.0
    %v2428 = vadd.f32 %v2396, 1.0
    %v2429 = vadd.f32 %v2397, 1.0
    %v2430 = vadd.f32 %v2398, 1.0
    %v2431 = vadd.f32 %v2399, 1.0
    %v2432 = vadd.f32 %v2400, 1.0
    %v2433 = vadd.f32 %v2401, 1.0
    %v2434 = vadd.f32 %v2402, 1.0
    %v2435 = vadd.f32 %v2403, 1.0
    %v2436 = vadd.f32 %v2404, 1.0
    %v2437 = vadd.f32 %v2405, 1.0
    %v2438 = vadd.f32 %v2406, 1.0
    %v2439 = vadd.f32 %v2407, 1.0
    %v2440 = vadd.f32 %v2408, 1.0
    %v2441 = vadd.f32 %v2409, 1.0
    %v2442 = vadd.f32 %v2410, 1.0
    %v2443 = vadd.f32 %v2411, 1.0
    %v2444 = vadd.f32 %v2412, 1.0
    %v2445 = vadd.f32 %v2413, 1.0
    %v2446 = vadd.f32 %v2414, 1.0
    %v2447 = vadd.f32 %v2415, 1.0
    %v2448 = vadd.f32 %v2416, 1.0
    %v2449 = vadd.f32 %v2417, 1.0
    %v2450 = vadd.f32 %v2418, 1.0
    %v2451 = vadd.f32 %v2419, 1.0
    %v2452 = vadd.f32 %v2420, 1.0
    %v2453 = vadd.f32 %v2421, 1.0
    %v2454 = vadd.f32 %v2422, 1.0
    %v2455 = vadd.f32 %v2423, 1.0
    %v2456 = vmul.f32 %v2424, 0.5
    %v2457 = vmul.f32 %v2425, 0.5
    %v2458 = vmul.f32 %v2426, 0.5
    %v2459 = vmul.f32 %v2427, 0.5
    %v2460 = vmul.f32 %v2428, 0.5
    %v2461 = vmul.f32 %v2429, 0.5
    %v2462 = vmul.f32 %v2430, 0.5
    %v2463 = vmul.f32 %v2431, 0.5
    %v2464 = vmul.f32 %v2432, 0.5
    %v2465 = vmul.f32 %v2433, 0.5
    %v2466 = vmul.f32 %v2434, 0.5
    %v2467 = vmul.f32 %v2435, 0.5
    %v2468 = vmul.f32 %v2436, 0.5
    %v2469 = vmul.f32 %v2437, 0.5
    %v2470 = vmul.f32 %v2438, 0.5
    %v2471 = vmul.f32 %v2439, 0.5
    %v2472 = vmul.f32 %v2440, 0.5
    %v2473 = vmul.f32 %v2441, 0.5
    %v2474 = vmul.f32 %v2442, 0.5
    %v2475 = vmul.f32 %v2443, 0.5
    %v2476 = vmul.f32 %v2444, 0.5
    %v2477 = vmul.f32 %v2445, 0.5
    %v2478 = vmul.f32 %v2446, 0.5
    %v2479 = vmul.f32 %v2447, 0.5
    %v2480 = vmul.f32 %v2448, 0.5
    %v2481 = vmul.f32 %v2449, 0.5
    %v2482 = vmul.f32 %v2450, 0.5
    %v2483 = vmul.f32 %v2451, 0.5
    %v2484 = vmul.f32 %v2452, 0.5
    %v2485 = vmul.f32 %v2453, 0.5
    %v2486 = vmul.f32 %v2454, 0.5
    %v2487 = vmul.f32 %v2455, 0.5
    %v2488 = vld [vmem:[%s8] sm:$0xff]
    %v2489 = vld [vmem:[%s8 + $0x8] sm:$0xff]
    %v2490 = vld [vmem:[%s8 + $0x10] sm:$0xff]
    %v2491 = vld [vmem:[%s8 + $0x18] sm:$0xff]
    %v2492 = vld [vmem:[%s8 + $0x20] sm:$0xff]
    %v2493 = vld [vmem:[%s8 + $0x28] sm:$0xff]
    %v2494 = vld [vmem:[%s8 + $0x30] sm:$0xff]
    %v2495 = vld [vmem:[%s8 + $0x38] sm:$0xff]
    %v2496 = vld [vmem:[%s8 + $0x40] sm:$0xff]
    %v2497 = vld [vmem:[%s8 + $0x48] sm:$0xff]
    %v2498 = vld [vmem:[%s8 + $0x50] sm:$0xff]
    %v2499 = vld [vmem:[%s8 + $0x58] sm:$0xff]
    %v2500 = vld [vmem:[%s8 + $0x60] sm:$0xff]
    %v2501 = vld [vmem:[%s8 + $0x68] sm:$0xff]
    %v2502 = vld [vmem:[%s8 + $0x70] sm:$0xff]
    %v2503 = vld [vmem:[%s8 + $0x78] sm:$0xff]
    %v2504 = vld [vmem:[%s8 + $0x80] sm:$0xff]
    %v2505 = vld [vmem:[%s8 + $0x88] sm:$0xff]
    %v2506 = vld [vmem:[%s8 + $0x90] sm:$0xff]
    %v2507 = vld [vmem:[%s8 + $0x98] sm:$0xff]
    %v2508 = vld [vmem:[%s8 + $0xa0] sm:$0xff]
    %v2509 = vld [vmem:[%s8 + $0xa8] sm:$0xff]
    %v2510 = vld [vmem:[%s8 + $0xb0] sm:$0xff]
    %v2511 = vld [vmem:[%s8 + $0xb8] sm:$0xff]
    %v2512 = vld [vmem:[%s8 + $0xc0] sm:$0xff]
    %v2513 = vld [vmem:[%s8 + $0xc8] sm:$0xff]
    %v2514 = vld [vmem:[%s8 + $0xd0] sm:$0xff]
    %v2515 = vld [vmem:[%s8 + $0xd8] sm:$0xff]
    %v2516 = vld [vmem:[%s8 + $0xe0] sm:$0xff]
    %v2517 = vld [vmem:[%s8 + $0xe8] sm:$0xff]
    %v2518 = vld [vmem:[%s8 + $0xf0] sm:$0xff]
    %v2519 = vld [vmem:[%s8 + $0xf8] sm:$0xff]
    %2521 = vset.pattern.permute.xlu0 0
    %2522 = vperm.xlu0 %2521, %v2488
    %v2523 = vpop.permute.xlu0 %2522
    %2526 = vset.pattern.permute.xlu0 0
    %2527 = vperm.xlu0 %2526, %v2489
    %v2528 = vpop.permute.xlu0 %2527
    %2531 = vset.pattern.permute.xlu0 0
    %2532 = vperm.xlu0 %2531, %v2490
    %v2533 = vpop.permute.xlu0 %2532
    %2536 = vset.pattern.permute.xlu0 0
    %2537 = vperm.xlu0 %2536, %v2491
    %v2538 = vpop.permute.xlu0 %2537
    %2541 = vset.pattern.permute.xlu0 0
    %2542 = vperm.xlu0 %2541, %v2492
    %v2543 = vpop.permute.xlu0 %2542
    %2546 = vset.pattern.permute.xlu0 0
    %2547 = vperm.xlu0 %2546, %v2493
    %v2548 = vpop.permute.xlu0 %2547
    %2551 = vset.pattern.permute.xlu0 0
    %2552 = vperm.xlu0 %2551, %v2494
    %v2553 = vpop.permute.xlu0 %2552
    %2556 = vset.pattern.permute.xlu0 0
    %2557 = vperm.xlu0 %2556, %v2495
    %v2558 = vpop.permute.xlu0 %2557
    %2561 = vset.pattern.permute.xlu0 0
    %2562 = vperm.xlu0 %2561, %v2496
    %v2563 = vpop.permute.xlu0 %2562
    %2566 = vset.pattern.permute.xlu0 0
    %2567 = vperm.xlu0 %2566, %v2497
    %v2568 = vpop.permute.xlu0 %2567
    %2571 = vset.pattern.permute.xlu0 0
    %2572 = vperm.xlu0 %2571, %v2498
    %v2573 = vpop.permute.xlu0 %2572
    %2576 = vset.pattern.permute.xlu0 0
    %2577 = vperm.xlu0 %2576, %v2499
    %v2578 = vpop.permute.xlu0 %2577
    %2581 = vset.pattern.permute.xlu0 0
    %2582 = vperm.xlu0 %2581, %v2500
    %v2583 = vpop.permute.xlu0 %2582
    %2586 = vset.pattern.permute.xlu0 0
    %2587 = vperm.xlu0 %2586, %v2501
    %v2588 = vpop.permute.xlu0 %2587
    %2591 = vset.pattern.permute.xlu0 0
    %2592 = vperm.xlu0 %2591, %v2502
    %v2593 = vpop.permute.xlu0 %2592
    %2596 = vset.pattern.permute.xlu0 0
    %2597 = vperm.xlu0 %2596, %v2503
    %v2598 = vpop.permute.xlu0 %2597
    %2601 = vset.pattern.permute.xlu0 0
    %2602 = vperm.xlu0 %2601, %v2504
    %v2603 = vpop.permute.xlu0 %2602
    %2606 = vset.pattern.permute.xlu0 0
    %2607 = vperm.xlu0 %2606, %v2505
    %v2608 = vpop.permute.xlu0 %2607
    %2611 = vset.pattern.permute.xlu0 0
    %2612 = vperm.xlu0 %2611, %v2506
    %v2613 = vpop.permute.xlu0 %2612
    %2616 = vset.pattern.permute.xlu0 0
    %2617 = vperm.xlu0 %2616, %v2507
    %v2618 = vpop.permute.xlu0 %2617
    %2621 = vset.pattern.permute.xlu0 0
    %2622 = vperm.xlu0 %2621, %v2508
    %v2623 = vpop.permute.xlu0 %2622
    %2626 = vset.pattern.permute.xlu0 0
    %2627 = vperm.xlu0 %2626, %v2509
    %v2628 = vpop.permute.xlu0 %2627
    %2631 = vset.pattern.permute.xlu0 0
    %2632 = vperm.xlu0 %2631, %v2510
    %v2633 = vpop.permute.xlu0 %2632
    %2636 = vset.pattern.permute.xlu0 0
    %2637 = vperm.xlu0 %2636, %v2511
    %v2638 = vpop.permute.xlu0 %2637
    %2641 = vset.pattern.permute.xlu0 0
    %2642 = vperm.xlu0 %2641, %v2512
    %v2643 = vpop.permute.xlu0 %2642
    %2646 = vset.pattern.permute.xlu0 0
    %2647 = vperm.xlu0 %2646, %v2513
    %v2648 = vpop.permute.xlu0 %2647
    %2651 = vset.pattern.permute.xlu0 0
    %2652 = vperm.xlu0 %2651, %v2514
    %v2653 = vpop.permute.xlu0 %2652
    %2656 = vset.pattern.permute.xlu0 0
    %2657 = vperm.xlu0 %2656, %v2515
    %v2658 = vpop.permute.xlu0 %2657
    %2661 = vset.pattern.permute.xlu0 0
    %2662 = vperm.xlu0 %2661, %v2516
    %v2663 = vpop.permute.xlu0 %2662
    %2666 = vset.pattern.permute.xlu0 0
    %2667 = vperm.xlu0 %2666, %v2517
    %v2668 = vpop.permute.xlu0 %2667
    %2671 = vset.pattern.permute.xlu0 0
    %2672 = vperm.xlu0 %2671, %v2518
    %v2673 = vpop.permute.xlu0 %2672
    %2676 = vset.pattern.permute.xlu0 0
    %2677 = vperm.xlu0 %2676, %v2519
    %v2678 = vpop.permute.xlu0 %2677
    %v2680 = vmul.f32 %v2456, %v2523
    %v2681 = vmul.f32 %v2457, %v2528
    %v2682 = vmul.f32 %v2458, %v2533
    %v2683 = vmul.f32 %v2459, %v2538
    %v2684 = vmul.f32 %v2460, %v2543
    %v2685 = vmul.f32 %v2461, %v2548
    %v2686 = vmul.f32 %v2462, %v2553
    %v2687 = vmul.f32 %v2463, %v2558
    %v2688 = vmul.f32 %v2464, %v2563
    %v2689 = vmul.f32 %v2465, %v2568
    %v2690 = vmul.f32 %v2466, %v2573
    %v2691 = vmul.f32 %v2467, %v2578
    %v2692 = vmul.f32 %v2468, %v2583
    %v2693 = vmul.f32 %v2469, %v2588
    %v2694 = vmul.f32 %v2470, %v2593
    %v2695 = vmul.f32 %v2471, %v2598
    %v2696 = vmul.f32 %v2472, %v2603
    %v2697 = vmul.f32 %v2473, %v2608
    %v2698 = vmul.f32 %v2474, %v2613
    %v2699 = vmul.f32 %v2475, %v2618
    %v2700 = vmul.f32 %v2476, %v2623
    %v2701 = vmul.f32 %v2477, %v2628
    %v2702 = vmul.f32 %v2478, %v2633
    %v2703 = vmul.f32 %v2479, %v2638
    %v2704 = vmul.f32 %v2480, %v2643
    %v2705 = vmul.f32 %v2481, %v2648
    %v2706 = vmul.f32 %v2482, %v2653
    %v2707 = vmul.f32 %v2483, %v2658
    %v2708 = vmul.f32 %v2484, %v2663
    %v2709 = vmul.f32 %v2485, %v2668
    %v2710 = vmul.f32 %v2486, %v2673
    %v2711 = vmul.f32 %v2487, %v2678
    %v2712 = vadd.f32 %v2680, %v2681
    %v2713 = vadd.f32 %v2712, %v2682
    %v2714 = vadd.f32 %v2713, %v2683
    %v2715 = vadd.f32 %v2714, %v2684
    %v2716 = vadd.f32 %v2715, %v2685
    %v2717 = vadd.f32 %v2716, %v2686
    %v2718 = vadd.f32 %v2717, %v2687
    %v2719 = vadd.f32 %v2718, %v2688
    %v2720 = vadd.f32 %v2719, %v2689
    %v2721 = vadd.f32 %v2720, %v2690
    %v2722 = vadd.f32 %v2721, %v2691
    %v2723 = vadd.f32 %v2722, %v2692
    %v2724 = vadd.f32 %v2723, %v2693
    %v2725 = vadd.f32 %v2724, %v2694
    %v2726 = vadd.f32 %v2725, %v2695
    %v2727 = vadd.f32 %v2726, %v2696
    %v2728 = vadd.f32 %v2727, %v2697
    %v2729 = vadd.f32 %v2728, %v2698
    %v2730 = vadd.f32 %v2729, %v2699
    %v2731 = vadd.f32 %v2730, %v2700
    %v2732 = vadd.f32 %v2731, %v2701
    %v2733 = vadd.f32 %v2732, %v2702
    %v2734 = vadd.f32 %v2733, %v2703
    %v2735 = vadd.f32 %v2734, %v2704
    %v2736 = vadd.f32 %v2735, %v2705
    %v2737 = vadd.f32 %v2736, %v2706
    %v2738 = vadd.f32 %v2737, %v2707
    %v2739 = vadd.f32 %v2738, %v2708
    %v2740 = vadd.f32 %v2739, %v2709
    %v2741 = vadd.f32 %v2740, %v2710
    %v2742 = vadd.f32 %v2741, %v2711
    %v2743 = vrot.slane %v2742, 4
    %v2744 = vadd.f32 %v2742, %v2743
    %v2745 = vrot.slane %v2744, 2
    %v2746 = vadd.f32 %v2744, %v2745
    %v2747 = vrot.slane %v2746, 1
    %v2748 = vadd.f32 %v2746, %v2747
    %v2749 = vld [vmem:[#allocation2] sm:$0x1]
    %2751 = vset.pattern.permute.xlu0 0
    %2752 = vperm.xlu0 %2751, %v2749
    %v2753 = vpop.permute.xlu0 %2752
    %v2755 = vperm.slane %v2753, 0
    %v2756 = vadd.f32 %v2748, %v2755
    %v2757 = vmul.f32 %v2756, 0.5
    %v2758 = vtanh.pop %v2757
    %v2759 = vadd.f32 %v2758, 1.0
    %v2760 = vmul.f32 %v2759, 0.5
    %2761 = vst [vmem:[#allocation3] sm:$0x1] %v2760
    // Predicated region
    $region42: #{tpu_custom_call.1} parent=1 // pred_check
      _
    $region43: #{tpu_custom_call.1} parent=1 // pred_check_branch
      %2763 = sbr.rel (0) target = $region45
    $region44: #{tpu_custom_call.1} parent=1 // pred_region
      %2765 = vsyncadd [#allocation4], 0
      %s2767 = sshll.u32 [#allocation3], 4
      %s2768 = int_to_ptr.vmem [resolvable:$true] %s2767
      %s2769 = sshll.u32 %s10, 4
      %s2770 = int_to_ptr.hbm [resolvable:$true] %s2769
      %2772 = dma.vmem_to_hbm [thread:$0]  %s2768, 16, %s2770, [#allocation4]
    $region45: #{tpu_custom_call.1} parent=1 // pred_fallthru
      _
    // Predicated region
    $region46: #{tpu_custom_call.1} parent=1 // pred_check
      _
    $region47: #{tpu_custom_call.1} parent=1 // pred_check_branch
      %2774 = sbr.rel (0) target = $region49
    $region48: #{tpu_custom_call.1} parent=1 // pred_region
      %2776 = dma.done [#allocation4], 16
    $region49: #{tpu_custom_call.1} parent=1 // pred_fallthru
      _
    %2777 = vsyncpa [#allocation4], 1

</llo_original>
